<compile_context>
chip_gen: v6e
topology: v6e:2x2x1
jax: 0.10.0
libtpu: 0.0.40
codegen_flags: <defaults>
</compile_context>

<pallas_src>
import functools

import jax
import jax.numpy as jnp
from jax.experimental import pallas as pl
from jax.experimental.pallas import tpu as pltpu


def _cross_attn_kernel(x_ref, enc_ref, wq_ref, wk_ref, wv_ref, wo_ref, bo_ref, o_ref,
                       k_sc, v_sc, *, heads: int, dim_head: int):
    """One grid step = (batch element, query tile). All tensors live in VMEM.

    x_ref  : (1, tq, Dq)   bf16  query-side activations (one query tile)
    enc_ref: (1, Sk, Dc)   bf16  encoder activations (full KV sequence; DMA'd once per b)
    wq_ref : (H, Dq, dh)   bf16  per-head Wq^T with softmax scale folded in
    wk_ref : (H, Dc, dh)   bf16  per-head Wk^T
    wv_ref : (H, Dc, dh)   bf16  per-head Wv^T
    wo_ref : (H, dh, Dq)   bf16  per-head Wo^T
    bo_ref : (1, Dq)       f32   output bias
    o_ref  : (1, tq, Dq)
    k_sc   : (H, Sk, dh)   bf16  cached K (persists across query tiles of one batch elem)
    v_sc   : (H, Sk, dh)   bf16  cached V
    """
    i = pl.program_id(1)

    # K/V projection happens only at the first query tile of each batch element and is
    # cached in VMEM scratch; query-tile axis is "arbitrary" so the scratch persists and
    # iterations run in order within a batch element.
    @pl.when(i == 0)
    def _compute_kv():
        enc = enc_ref[0]                                        # (Sk, Dc)
        sk, dc = enc.shape
        eb = jnp.broadcast_to(enc, (heads, sk, dc))
        k_sc[...] = jnp.einsum('hkc,hcd->hkd', eb, wk_ref[...],
                               preferred_element_type=jnp.float32).astype(k_sc.dtype)
        v_sc[...] = jnp.einsum('hkc,hcd->hkd', eb, wv_ref[...],
                               preferred_element_type=jnp.float32).astype(v_sc.dtype)

    x = x_ref[0]                                                # (tq, Dq)
    tq, dq = x.shape

    # Head-batched Q projection (bf16 MXU matmul, f32 accumulate); scale is pre-folded.
    xb = jnp.broadcast_to(x, (heads, tq, dq))
    q = jnp.einsum('hqc,hcd->hqd', xb, wq_ref[...],
                   preferred_element_type=jnp.float32).astype(jnp.bfloat16)   # (H, tq, dh)

    # Attention scores + softmax in f32.
    s = jnp.einsum('hqd,hkd->hqk', q, k_sc[...],
                   preferred_element_type=jnp.float32)                        # (H, tq, Sk)
    m = jnp.max(s, axis=-1, keepdims=True)
    p = jnp.exp(s - m)
    denom = jnp.sum(p, axis=-1, keepdims=True)
    probs = (p * pl.reciprocal(denom, approx=True)).astype(jnp.bfloat16)

    o = jnp.einsum('hqk,hkd->hqd', probs, v_sc[...],
                   preferred_element_type=jnp.float32).astype(jnp.bfloat16)   # (H, tq, dh)

    # Fused output projection: per-head partial products summed over heads, so the
    # concatenated (tq, heads*dh) tensor is never materialized.
    part = jnp.einsum('hqd,hdo->hqo', o, wo_ref[...],
                      preferred_element_type=jnp.float32)                     # (H, tq, Dq)
    y = jnp.sum(part, axis=0) + bo_ref[...]                                   # (tq, Dq)
    o_ref[0] = y.astype(o_ref.dtype)


def _pick_vmem_limit_bytes():
    """Pick a scoped-VMEM budget with headroom under the chip's physical VMEM."""
    cap = 128 * 1024 * 1024
    try:
        info = pltpu.get_tpu_info()
        cap = int(getattr(info, "vmem_capacity_bytes", cap))
    except Exception:
        pass
    # v7x: 64 MiB physical -> ~40 MiB budget; v5e/v6e: 128 MiB -> 64 MiB budget.
    return int(min(64 * 1024 * 1024, max(32 * 1024 * 1024, cap - 24 * 1024 * 1024)))


def cross_attention_pallas(hidden_states, encoder_hidden_states, params,
                           *, heads: int, dim_head: int, q_tile: int = 512):
    """hidden_states: (B, Sq, Dq); encoder_hidden_states: (B, Sk, Dc) or None."""
    if encoder_hidden_states is None:
        encoder_hidden_states = hidden_states

    B, Sq, Dq = hidden_states.shape
    _, Sk, Dc = encoder_hidden_states.shape
    scale = dim_head ** (-0.5)
    f32 = jnp.float32
    bf16 = jnp.bfloat16

    # One-time wrapper-side weight prep: transpose to (in, out), fold softmax scale
    # into Wq, split per head, cast to bf16 for the MXU.
    wq_h = ((params["wq"].astype(f32) * scale).T
            .reshape(Dq, heads, dim_head).transpose(1, 0, 2).astype(bf16))   # (H, Dq, dh)
    wk_h = (params["wk"].astype(f32).T
            .reshape(Dc, heads, dim_head).transpose(1, 0, 2).astype(bf16))   # (H, Dc, dh)
    wv_h = (params["wv"].astype(f32).T
            .reshape(Dc, heads, dim_head).transpose(1, 0, 2).astype(bf16))   # (H, Dc, dh)
    wo_h = (params["wo"].astype(f32).T
            .reshape(heads, dim_head, Dq).astype(bf16))                      # (H, dh, Dq)
    bo2d = params["bo"].astype(f32).reshape(1, Dq)

    # Activations in bf16 (halves HBM DMA & VMEM); accumulation/softmax stay f32.
    x_bf = hidden_states.astype(bf16)
    e_bf = encoder_hidden_states.astype(bf16)

    # Query-tile size: multiple of 8 sublanes, must divide Sq (fallback: whole Sq).
    tq = min(q_tile, Sq)
    if Sq % tq != 0 or (tq != Sq and tq % 8 != 0):
        tq = Sq
    n_q = Sq // tq

    kernel = functools.partial(_cross_attn_kernel, heads=heads, dim_head=dim_head)

    def const(shape):
        return pl.BlockSpec(shape, lambda b, i: tuple(0 for _ in shape))

    return pl.pallas_call(
        kernel,
        out_shape=jax.ShapeDtypeStruct((B, Sq, Dq), hidden_states.dtype),
        grid_spec=pltpu.PrefetchScalarGridSpec(
            num_scalar_prefetch=0,
            grid=(B, n_q),
            in_specs=[
                pl.BlockSpec((1, tq, Dq), lambda b, i: (b, i, 0)),   # hidden tile
                pl.BlockSpec((1, Sk, Dc), lambda b, i: (b, 0, 0)),   # encoder (DMA once / b)
                const((heads, Dq, dim_head)),                        # Wq^T (scaled, per head)
                const((heads, Dc, dim_head)),                        # Wk^T
                const((heads, Dc, dim_head)),                        # Wv^T
                const((heads, dim_head, Dq)),                        # Wo^T
                const((1, Dq)),                                      # output bias
            ],
            out_specs=pl.BlockSpec((1, tq, Dq), lambda b, i: (b, i, 0)),
            scratch_shapes=[
                pltpu.VMEM((heads, Sk, dim_head), bf16),             # cached K per batch elem
                pltpu.VMEM((heads, Sk, dim_head), bf16),             # cached V per batch elem
            ]),
        compiler_params=pltpu.CompilerParams(
            # Query-tile axis must be "arbitrary": K/V scratch computed at i==0 is reused
            # by the later tiles of the same batch element.
            dimension_semantics=("parallel", "arbitrary"),
            vmem_limit_bytes=_pick_vmem_limit_bytes()),
    )(x_bf, e_bf, wq_h, wk_h, wv_h, wo_h, bo2d)


def cross_attention_reference(hidden_states, encoder_hidden_states, params,
                              *, heads: int, dim_head: int):
    """Pure-JAX f32 reference mirroring the PyTorch forward (default path)."""
    if encoder_hidden_states is None:
        encoder_hidden_states = hidden_states
    scale = dim_head ** (-0.5)
    q = hidden_states @ params["wq"].T
    k = encoder_hidden_states @ params["wk"].T
    v = encoder_hidden_states @ params["wv"].T
    B, Sq, inner = q.shape
    Sk = k.shape[1]
    qh = q.reshape(B, Sq, heads, dim_head).transpose(0, 2, 1, 3)
    kh = k.reshape(B, Sk, heads, dim_head).transpose(0, 2, 1, 3)
    vh = v.reshape(B, Sk, heads, dim_head).transpose(0, 2, 1, 3)
    scores = jnp.einsum("bhqd,bhkd->bhqk", qh, kh) * scale
    probs = jax.nn.softmax(scores, axis=-1)
    out = jnp.einsum("bhqk,bhkd->bhqd", probs, vh)
    out = out.transpose(0, 2, 1, 3).reshape(B, Sq, inner)
    return out @ params["wo"].T + params["bo"]


if __name__ == "__main__":
    # Small shapes consistent with the module.
    B, Sq, Sk = 2, 16, 8
    query_dim = 32
    cross_attention_dim = 32
    heads, dim_head = 4, 8
    inner = heads * dim_head

    key = jax.random.PRNGKey(0)
    k0, k1, k2, k3, k4, k5, k6 = jax.random.split(key, 7)

    # Deterministic parameter init (PyTorch Linear convention: W is (out, in)).
    params = {
        "wq": jax.random.normal(k0, (inner, query_dim), jnp.float32) * 0.1,
        "wk": jax.random.normal(k1, (inner, cross_attention_dim), jnp.float32) * 0.1,
        "wv": jax.random.normal(k2, (inner, cross_attention_dim), jnp.float32) * 0.1,
        "wo": jax.random.normal(k3, (query_dim, inner), jnp.float32) * 0.1,
        "bo": jax.random.normal(k4, (query_dim,), jnp.float32) * 0.1,
    }

    hidden_states = jax.random.normal(k5, (B, Sq, query_dim), jnp.float32)
    encoder_hidden_states = jax.random.normal(k6, (B, Sk, cross_attention_dim), jnp.float32)

    out = cross_attention_pallas(hidden_states, encoder_hidden_states, params,
                                 heads=heads, dim_head=dim_head)
    out = jax.block_until_ready(out)

    ref = cross_attention_reference(hidden_states, encoder_hidden_states, params,
                                    heads=heads, dim_head=dim_head)
    assert out.shape == (B, Sq, query_dim)
    # bf16 matmuls + approx reciprocal -> loose tolerance vs the f32 reference.
    assert jnp.allclose(out, ref, atol=3e-2, rtol=3e-2), "mismatch vs reference"

    # TODO(synk): group_norm / added_kv_proj_dim / attention_mask / dropout>0 and the
    # sliced / xformers attention paths are not exercised by the default config and are
    # not implemented in-kernel; very large Sk would additionally want an online-softmax
    # (flash) formulation to bound the (tq, Sk) scores in VMEM.

    print("KERNEL_OK")
</pallas_src>

<mosaic_0001>
module attributes {stable_mosaic.version = 11 : i64} {
  func.func @_cross_attn_kernel(%arg0: i32, %arg1: i32, %arg2: memref<1x16x32xbf16, #tpu.memory_space<vmem>>, %arg3: memref<1x8x32xbf16, #tpu.memory_space<vmem>>, %arg4: memref<4x32x8xbf16, #tpu.memory_space<vmem>>, %arg5: memref<4x32x8xbf16, #tpu.memory_space<vmem>>, %arg6: memref<4x32x8xbf16, #tpu.memory_space<vmem>>, %arg7: memref<4x8x32xbf16, #tpu.memory_space<vmem>>, %arg8: memref<1x32xf32, #tpu.memory_space<vmem>>, %arg9: memref<1x16x32xf32, #tpu.memory_space<vmem>>, %arg10: memref<4x8x8xbf16, #tpu.memory_space<vmem>>, %arg11: memref<4x8x8xbf16, #tpu.memory_space<vmem>>) attributes {dimension_semantics = [#tpu.dimension_semantics<parallel>, #tpu.dimension_semantics<arbitrary>], iteration_bounds = array<i64: 2, 1>, scalar_prefetch = 0 : i64, scratch_operands = 2 : i64, tpu.core_type = #tpu.core_type<tc>, window_params = [{transform_indices = @transform_0, window_bounds = array<i64: 1, 16, 32>}, {transform_indices = @transform_1, window_bounds = array<i64: 1, 8, 32>}, {pipeline_mode = #tpu.pipeline_mode<synchronous>, transform_indices = @transform_2, window_bounds = array<i64: 4, 32, 8>}, {pipeline_mode = #tpu.pipeline_mode<synchronous>, transform_indices = @transform_3, window_bounds = array<i64: 4, 32, 8>}, {pipeline_mode = #tpu.pipeline_mode<synchronous>, transform_indices = @transform_4, window_bounds = array<i64: 4, 32, 8>}, {pipeline_mode = #tpu.pipeline_mode<synchronous>, transform_indices = @transform_5, window_bounds = array<i64: 4, 8, 32>}, {pipeline_mode = #tpu.pipeline_mode<synchronous>, transform_indices = @transform_6, window_bounds = array<i64: 1, 32>}, {transform_indices = @transform_7, window_bounds = array<i64: 1, 16, 32>}]} {
    %c0_i32 = arith.constant 0 : i32
    %0 = arith.cmpi eq, %arg1, %c0_i32 : i32
    %1 = arith.extui %0 : i1 to i32
    %c0_i32_0 = arith.constant 0 : i32
    %2 = arith.cmpi ne, %1, %c0_i32_0 : i32
    scf.if %2 {
      %c0_26 = arith.constant 0 : index
      %c0_27 = arith.constant 0 : index
      %c0_28 = arith.constant 0 : index
      %35 = vector.load %arg3[%c0_26, %c0_27, %c0_28] : memref<1x8x32xbf16, #tpu.memory_space<vmem>>, vector<1x8x32xbf16>
      %36 = vector.shape_cast %35 : vector<1x8x32xbf16> to vector<8x32xbf16>
      %37 = vector.shape_cast %36 : vector<8x32xbf16> to vector<1x8x32xbf16>
      %38 = vector.broadcast %37 : vector<1x8x32xbf16> to vector<4x8x32xbf16>
      %c0_29 = arith.constant 0 : index
      %c0_30 = arith.constant 0 : index
      %c0_31 = arith.constant 0 : index
      %39 = vector.load %arg5[%c0_29, %c0_30, %c0_31] : memref<4x32x8xbf16, #tpu.memory_space<vmem>>, vector<4x32x8xbf16>
      "tpu.trace_start"() <{level = 10 : i32, message = "hkc,hcd->hkd"}> : () -> ()
      %cst_32 = arith.constant dense<0.000000e+00> : vector<4x8x8xf32>
      %40 = tpu.matmul %38, %39, %cst_32 {dimension_numbers = #tpu.dot_dimension_numbers<[2], [1], [1], [2], [0, 0, 0, 1, 1, 2], [0], [0]>} : vector<4x8x32xbf16>, vector<4x32x8xbf16>, vector<4x8x8xf32> -> vector<4x8x8xf32>
      "tpu.trace_stop"() : () -> ()
      %41 = arith.truncf %40 : vector<4x8x8xf32> to vector<4x8x8xbf16>
      %c0_33 = arith.constant 0 : index
      %c0_34 = arith.constant 0 : index
      %c0_35 = arith.constant 0 : index
      %42 = vector.load %arg10[%c0_33, %c0_34, %c0_35] : memref<4x8x8xbf16, #tpu.memory_space<vmem>>, vector<4x8x8xbf16>
      tpu.vector_store %arg10[%c0_33, %c0_34, %c0_35], %41 {strides = array<i32>} : memref<4x8x8xbf16, #tpu.memory_space<vmem>>, vector<4x8x8xbf16>,
      %c0_36 = arith.constant 0 : index
      %c0_37 = arith.constant 0 : index
      %c0_38 = arith.constant 0 : index
      %43 = vector.load %arg6[%c0_36, %c0_37, %c0_38] : memref<4x32x8xbf16, #tpu.memory_space<vmem>>, vector<4x32x8xbf16>
      "tpu.trace_start"() <{level = 10 : i32, message = "hkc,hcd->hkd"}> : () -> ()
      %cst_39 = arith.constant dense<0.000000e+00> : vector<4x8x8xf32>
      %44 = tpu.matmul %38, %43, %cst_39 {dimension_numbers = #tpu.dot_dimension_numbers<[2], [1], [1], [2], [0, 0, 0, 1, 1, 2], [0], [0]>} : vector<4x8x32xbf16>, vector<4x32x8xbf16>, vector<4x8x8xf32> -> vector<4x8x8xf32>
      "tpu.trace_stop"() : () -> ()
      %45 = arith.truncf %44 : vector<4x8x8xf32> to vector<4x8x8xbf16>
      %c0_40 = arith.constant 0 : index
      %c0_41 = arith.constant 0 : index
      %c0_42 = arith.constant 0 : index
      %46 = vector.load %arg11[%c0_40, %c0_41, %c0_42] : memref<4x8x8xbf16, #tpu.memory_space<vmem>>, vector<4x8x8xbf16>
      tpu.vector_store %arg11[%c0_40, %c0_41, %c0_42], %45 {strides = array<i32>} : memref<4x8x8xbf16, #tpu.memory_space<vmem>>, vector<4x8x8xbf16>,
    } else {
    }
    %c0 = arith.constant 0 : index
    %c0_1 = arith.constant 0 : index
    %c0_2 = arith.constant 0 : index
    %3 = vector.load %arg2[%c0, %c0_1, %c0_2] : memref<1x16x32xbf16, #tpu.memory_space<vmem>>, vector<1x16x32xbf16>
    %4 = vector.shape_cast %3 : vector<1x16x32xbf16> to vector<16x32xbf16>
    %5 = vector.shape_cast %4 : vector<16x32xbf16> to vector<1x16x32xbf16>
    %6 = vector.broadcast %5 : vector<1x16x32xbf16> to vector<4x16x32xbf16>
    %c0_3 = arith.constant 0 : index
    %c0_4 = arith.constant 0 : index
    %c0_5 = arith.constant 0 : index
    %7 = vector.load %arg4[%c0_3, %c0_4, %c0_5] : memref<4x32x8xbf16, #tpu.memory_space<vmem>>, vector<4x32x8xbf16>
    "tpu.trace_start"() <{level = 10 : i32, message = "hqc,hcd->hqd"}> : () -> ()
    %cst = arith.constant dense<0.000000e+00> : vector<4x16x8xf32>
    %8 = tpu.matmul %6, %7, %cst {dimension_numbers = #tpu.dot_dimension_numbers<[2], [1], [1], [2], [0, 0, 0, 1, 1, 2], [0], [0]>} : vector<4x16x32xbf16>, vector<4x32x8xbf16>, vector<4x16x8xf32> -> vector<4x16x8xf32>
    "tpu.trace_stop"() : () -> ()
    %9 = arith.truncf %8 : vector<4x16x8xf32> to vector<4x16x8xbf16>
    %c0_6 = arith.constant 0 : index
    %c0_7 = arith.constant 0 : index
    %c0_8 = arith.constant 0 : index
    %10 = vector.load %arg10[%c0_6, %c0_7, %c0_8] : memref<4x8x8xbf16, #tpu.memory_space<vmem>>, vector<4x8x8xbf16>
    "tpu.trace_start"() <{level = 10 : i32, message = "hqd,hkd->hqk"}> : () -> ()
    %cst_9 = arith.constant dense<0.000000e+00> : vector<4x16x8xf32>
    %11 = tpu.matmul %9, %10, %cst_9 {dimension_numbers = #tpu.dot_dimension_numbers<[2], [2], [1], [1], [0, 0, 0, 1, 1, 1], [0], [0]>} : vector<4x16x8xbf16>, vector<4x8x8xbf16>, vector<4x16x8xf32> -> vector<4x16x8xf32>
    "tpu.trace_stop"() : () -> ()
    %cst_10 = arith.constant dense<0xFF800000> : vector<4x16xf32>
    %12 = vector.multi_reduction <maximumf>, %11, %cst_10 [2] : vector<4x16x8xf32> to vector<4x16xf32>
    %13 = vector.shape_cast %12 : vector<4x16xf32> to vector<4x16x1xf32>
    %14 = vector.broadcast %13 : vector<4x16x1xf32> to vector<4x16x8xf32>
    %15 = arith.subf %11, %14 : vector<4x16x8xf32>
    %16 = math.exp %15 : vector<4x16x8xf32>
    %cst_11 = arith.constant dense<0.000000e+00> : vector<4x16xf32>
    %17 = vector.multi_reduction <add>, %16, %cst_11 [2] : vector<4x16x8xf32> to vector<4x16xf32>
    %18 = vector.shape_cast %17 : vector<4x16xf32> to vector<4x16x1xf32>
    %19 = tpu.reciprocal %18 {approx = true} : vector<4x16x1xf32> -> vector<4x16x1xf32>
    %20 = vector.broadcast %19 : vector<4x16x1xf32> to vector<4x16x8xf32>
    %21 = arith.mulf %16, %20 : vector<4x16x8xf32>
    %22 = arith.truncf %21 : vector<4x16x8xf32> to vector<4x16x8xbf16>
    %c0_12 = arith.constant 0 : index
    %c0_13 = arith.constant 0 : index
    %c0_14 = arith.constant 0 : index
    %23 = vector.load %arg11[%c0_12, %c0_13, %c0_14] : memref<4x8x8xbf16, #tpu.memory_space<vmem>>, vector<4x8x8xbf16>
    "tpu.trace_start"() <{level = 10 : i32, message = "hqk,hkd->hqd"}> : () -> ()
    %cst_15 = arith.constant dense<0.000000e+00> : vector<4x16x8xf32>
    %24 = tpu.matmul %22, %23, %cst_15 {dimension_numbers = #tpu.dot_dimension_numbers<[2], [1], [1], [2], [0, 0, 0, 1, 1, 2], [0], [0]>} : vector<4x16x8xbf16>, vector<4x8x8xbf16>, vector<4x16x8xf32> -> vector<4x16x8xf32>
    "tpu.trace_stop"() : () -> ()
    %25 = arith.truncf %24 : vector<4x16x8xf32> to vector<4x16x8xbf16>
    %c0_16 = arith.constant 0 : index
    %c0_17 = arith.constant 0 : index
    %c0_18 = arith.constant 0 : index
    %26 = vector.load %arg7[%c0_16, %c0_17, %c0_18] : memref<4x8x32xbf16, #tpu.memory_space<vmem>>, vector<4x8x32xbf16>
    "tpu.trace_start"() <{level = 10 : i32, message = "hqd,hdo->hqo"}> : () -> ()
    %cst_19 = arith.constant dense<0.000000e+00> : vector<4x16x32xf32>
    %27 = tpu.matmul %25, %26, %cst_19 {dimension_numbers = #tpu.dot_dimension_numbers<[2], [1], [1], [2], [0, 0, 0, 1, 1, 2], [0], [0]>} : vector<4x16x8xbf16>, vector<4x8x32xbf16>, vector<4x16x32xf32> -> vector<4x16x32xf32>
    "tpu.trace_stop"() : () -> ()
    %cst_20 = arith.constant dense<0.000000e+00> : vector<16x32xf32>
    %28 = vector.multi_reduction <add>, %27, %cst_20 [0] : vector<4x16x32xf32> to vector<16x32xf32>
    %c0_21 = arith.constant 0 : index
    %c0_22 = arith.constant 0 : index
    %29 = vector.load %arg8[%c0_21, %c0_22] : memref<1x32xf32, #tpu.memory_space<vmem>>, vector<1x32xf32>
    %30 = vector.broadcast %29 : vector<1x32xf32> to vector<16x32xf32>
    %31 = arith.addf %28, %30 : vector<16x32xf32>
    %c0_23 = arith.constant 0 : index
    %c0_24 = arith.constant 0 : index
    %c0_25 = arith.constant 0 : index
    %32 = vector.load %arg9[%c0_23, %c0_24, %c0_25] : memref<1x16x32xf32, #tpu.memory_space<vmem>>, vector<1x16x32xf32>
    %33 = vector.shape_cast %32 : vector<1x16x32xf32> to vector<16x32xf32>
    %34 = vector.shape_cast %31 : vector<16x32xf32> to vector<1x16x32xf32>
    tpu.vector_store %arg9[%c0_23, %c0_24, %c0_25], %34 {strides = array<i32>} : memref<1x16x32xf32, #tpu.memory_space<vmem>>, vector<1x16x32xf32>,
    return
  }
  func.func @transform_0(%arg0: i32, %arg1: i32) -> (i32, i32, i32) {
    %c0_i32 = arith.constant 0 : i32
    %c0_i32_0 = arith.constant 0 : i32
    return %arg0, %arg1, %c0_i32 : i32, i32, i32
  }
  func.func @transform_1(%arg0: i32, %arg1: i32) -> (i32, i32, i32) {
    %c0_i32 = arith.constant 0 : i32
    %c0_i32_0 = arith.constant 0 : i32
    %c0_i32_1 = arith.constant 0 : i32
    return %arg0, %c0_i32, %c0_i32_0 : i32, i32, i32
  }
  func.func @transform_2(%arg0: i32, %arg1: i32) -> (i32, i32, i32) {
    %c0_i32 = arith.constant 0 : i32
    %c0_i32_0 = arith.constant 0 : i32
    %c0_i32_1 = arith.constant 0 : i32
    %c0_i32_2 = arith.constant 0 : i32
    return %c0_i32, %c0_i32_0, %c0_i32_1 : i32, i32, i32
  }
  func.func @transform_3(%arg0: i32, %arg1: i32) -> (i32, i32, i32) {
    %c0_i32 = arith.constant 0 : i32
    %c0_i32_0 = arith.constant 0 : i32
    %c0_i32_1 = arith.constant 0 : i32
    %c0_i32_2 = arith.constant 0 : i32
    return %c0_i32, %c0_i32_0, %c0_i32_1 : i32, i32, i32
  }
  func.func @transform_4(%arg0: i32, %arg1: i32) -> (i32, i32, i32) {
    %c0_i32 = arith.constant 0 : i32
    %c0_i32_0 = arith.constant 0 : i32
    %c0_i32_1 = arith.constant 0 : i32
    %c0_i32_2 = arith.constant 0 : i32
    return %c0_i32, %c0_i32_0, %c0_i32_1 : i32, i32, i32
  }
  func.func @transform_5(%arg0: i32, %arg1: i32) -> (i32, i32, i32) {
    %c0_i32 = arith.constant 0 : i32
    %c0_i32_0 = arith.constant 0 : i32
    %c0_i32_1 = arith.constant 0 : i32
    %c0_i32_2 = arith.constant 0 : i32
    return %c0_i32, %c0_i32_0, %c0_i32_1 : i32, i32, i32
  }
  func.func @transform_6(%arg0: i32, %arg1: i32) -> (i32, i32) {
    %c0_i32 = arith.constant 0 : i32
    %c0_i32_0 = arith.constant 0 : i32
    %c0_i32_1 = arith.constant 0 : i32
    return %c0_i32, %c0_i32_0 : i32, i32
  }
  func.func @transform_7(%arg0: i32, %arg1: i32) -> (i32, i32, i32) {
    %c0_i32 = arith.constant 0 : i32
    %c0_i32_0 = arith.constant 0 : i32
    return %arg0, %arg1, %c0_i32 : i32, i32, i32
  }
}

</mosaic_0001>

<llo_original>
// kernel: tpu_custom_call.1
$region0: #{tpu_custom_call.1}
  #allocation0 [shape = 'u32[]', space=smem, size = 0x4, offset = 0x4, fixed_abs, tag = 'smem constant byte address 0x4 - core index']
  #allocation1 [shape = 'u32[144,128]{1,0:T(1,128)}', space=vmem, size = 0x12000, scoped, tag = 'internal scratch']
  #allocation2 [shape = 'bf16[4,8,8]{2,1,0:T(8,128)(2,1)}', space=vmem, size = 0x2000, scoped, tag = 'scratch operand']
  #allocation3 [shape = 'bf16[4,8,8]{2,1,0:T(8,128)(2,1)}', space=vmem, size = 0x2000, scoped, tag = 'scratch operand']
  %s0 = inlined_call_operand.vmem [shape: bf16[2,16,32], index: 0, kind: input, shape index: {}]
  %s1 = inlined_call_operand.vmem [shape: bf16[2,8,32], index: 1, kind: input, shape index: {}]
  %s2 = inlined_call_operand.vmem [shape: bf16[4,32,8], index: 2, kind: input, shape index: {}]
  %s3 = inlined_call_operand.vmem [shape: bf16[4,32,8], index: 3, kind: input, shape index: {}]
  %s4 = inlined_call_operand.vmem [shape: bf16[4,32,8], index: 4, kind: input, shape index: {}]
  %s5 = inlined_call_operand.vmem [shape: bf16[4,8,32], index: 5, kind: input, shape index: {}]
  %s6 = inlined_call_operand.vmem [shape: f32[1,32], index: 6, kind: input, shape index: {}]
  %s7 = inlined_call_operand.hbm [shape: f32[2,16,32], index: 7, kind: output, shape index: {}]
  %s8 = sld [smem:[#allocation0]]
  $region65: #{tpu_custom_call.1} parent=0
    _
  %s10 = ssub.s32 1, %s8
  %s11 = scalar_select 0, %s10, %s8
  $region1: #{tpu_custom_call.1} parent=0
    #allocation4 [shape = 'u8[16384]{0}', space=vmem, size = 0x4000, scoped, tag = 'output window, operand 0']
    #allocation5 [shape = 's32[2]{0}', space=sflag, size = 0x8, scoped, tag = 'scoped memory for tpu_custom_call.1']
    %12 = vsyncpa [#allocation5], 0
    %s13 = scalar_lea.sflag [#allocation5], 1
    %14 = vsyncpa %s13, 0
    loop: start=0, step=1, limit=4
    $region2: #{tpu_custom_call.1} parent=1 // loop_pre_header
      _
    $region3: #{tpu_custom_call.1} parent=1 // loop_header
      %s16 = sphi 0, %s20
      %p17 = scmp.ge.s32.totalorder %s16, 4
      %s23 = sphi 0, %s35
      %s24 = sphi 0, %s31
      %s25 = sphi 0, %s23
      %s26 = sphi 0, %s24
      %s27 = sphi 0, %s25
      %s28 = sphi 0, %s26
      %s40 = sphi 0, %s42
      %s43 = sphi 0, %s40
      %s44 = sphi 0, %s43
      %s60 = sphi 0, %s44
      %s66 = sphi 0, %s68
      %s69 = sphi 0, %s66
      %s70 = sphi 0, %s69
      %s86 = sphi 0, %s70
      %s90 = sphi 0, %s90
      %s92 = sphi 0, %s90
      %s93 = sphi 0, %s92
      %s107 = sphi 0, %s93
      %s111 = sphi 0, %s111
      %s113 = sphi 0, %s111
      %s114 = sphi 0, %s113
      %s128 = sphi 0, %s114
      %s132 = sphi 0, %s132
      %s134 = sphi 0, %s132
      %s135 = sphi 0, %s134
      %s149 = sphi 0, %s135
      %s153 = sphi 0, %s153
      %s155 = sphi 0, %s153
      %s156 = sphi 0, %s155
      %s170 = sphi 0, %s156
      %s174 = sphi 0, %s174
      %s176 = sphi 0, %s174
      %s177 = sphi 0, %s176
      %s191 = sphi 0, %s177
      %s199 = sphi 0, %s201
      %s202 = sphi 0, %s199
      %s203 = sphi 0, %s202
      %s219 = sphi 0, %s203
    $region4: #{tpu_custom_call.1} parent=1 // loop_header_branch
      %19 = sbr.rel (%p17) target = $region8
    $region5: #{tpu_custom_call.1} parent=1 // loop_body
      %s21 = ssub.s32 %s16, 1
      %s22 = ssub.s32 %s16, 2
      %s29 = sadd.s32 1, %s24
      %p30 = scmp.ge.s32.totalorder %s29, 1
      %s31 = scalar_select %p30, 0, %s29
      %s32 = sadd.s32 1, %s23
      %s33 = scalar_select %p30, %s32, %s23
      %p34 = scmp.ge.s32.totalorder %s33, 2
      %s35 = scalar_select %p34, 0, %s33
      %s36 = ssub.s32 %s23, %s35
      %s37 = ssub.s32 %s24, %s31
      %s38 = sor.u32 %s36, %s37
      %p39 = scmp.eq.s32.totalorder %s38, 0
      %s41 = sadd.s32 %s40, 1
      %s42 = scalar_select %p39, %s40, %s41
      %p45 = pneg %p39
      %p46 = scmp.eq.s32.totalorder %s16, 1
      %p47 = por %p45, %p46
      %p48 = scmp.ne.s32.totalorder %s40, %s43
      %p49 = scmp.eq.s32.totalorder %s16, 0
      %p50 = por %p48, %p49
      %p51 = scmp.ne.s32.totalorder %s40, %s43
      %p52 = scmp.eq.s32.totalorder %s21, 1
      %p53 = por %p51, %p52
      %p54 = scmp.ne.s32.totalorder %s43, %s44
      %p55 = scmp.eq.s32.totalorder %s21, 0
      %p56 = por %p54, %p55
      %p57 = scmp.ne.s32.totalorder %s43, %s44
      %p58 = scmp.eq.s32.totalorder %s22, 1
      %p59 = por %p57, %p58
      %p61 = scmp.ne.s32.totalorder %s44, %s60
      %p62 = scmp.eq.s32.totalorder %s22, 0
      %p63 = por %p61, %p62
      %s64 = ssub.s32 %s23, %s35
      %p65 = scmp.eq.s32.totalorder %s64, 0
      %s67 = sadd.s32 %s66, 1
      %s68 = scalar_select %p65, %s66, %s67
      %p71 = pneg %p65
      %p72 = scmp.eq.s32.totalorder %s16, 1
      %p73 = por %p71, %p72
      %p74 = scmp.ne.s32.totalorder %s66, %s69
      %p75 = scmp.eq.s32.totalorder %s16, 0
      %p76 = por %p74, %p75
      %p77 = scmp.ne.s32.totalorder %s66, %s69
      %p78 = scmp.eq.s32.totalorder %s21, 1
      %p79 = por %p77, %p78
      %p80 = scmp.ne.s32.totalorder %s69, %s70
      %p81 = scmp.eq.s32.totalorder %s21, 0
      %p82 = por %p80, %p81
      %p83 = scmp.ne.s32.totalorder %s69, %s70
      %p84 = scmp.eq.s32.totalorder %s22, 1
      %p85 = por %p83, %p84
      %p87 = scmp.ne.s32.totalorder %s70, %s86
      %p88 = scmp.eq.s32.totalorder %s22, 0
      %p89 = por %p87, %p88
      %s91 = sadd.s32 %s90, 1
      %p94 = scmp.eq.s32.totalorder %s16, 1
      %p95 = scmp.ne.s32.totalorder %s90, %s92
      %p96 = scmp.eq.s32.totalorder %s16, 0
      %p97 = por %p95, %p96
      %p98 = scmp.ne.s32.totalorder %s90, %s92
      %p99 = scmp.eq.s32.totalorder %s21, 1
      %p100 = por %p98, %p99
      %p101 = scmp.ne.s32.totalorder %s92, %s93
      %p102 = scmp.eq.s32.totalorder %s21, 0
      %p103 = por %p101, %p102
      %p104 = scmp.ne.s32.totalorder %s92, %s93
      %p105 = scmp.eq.s32.totalorder %s22, 1
      %p106 = por %p104, %p105
      %p108 = scmp.ne.s32.totalorder %s93, %s107
      %p109 = scmp.eq.s32.totalorder %s22, 0
      %p110 = por %p108, %p109
      %s112 = sadd.s32 %s111, 1
      %p115 = scmp.eq.s32.totalorder %s16, 1
      %p116 = scmp.ne.s32.totalorder %s111, %s113
      %p117 = scmp.eq.s32.totalorder %s16, 0
      %p118 = por %p116, %p117
      %p119 = scmp.ne.s32.totalorder %s111, %s113
      %p120 = scmp.eq.s32.totalorder %s21, 1
      %p121 = por %p119, %p120
      %p122 = scmp.ne.s32.totalorder %s113, %s114
      %p123 = scmp.eq.s32.totalorder %s21, 0
      %p124 = por %p122, %p123
      %p125 = scmp.ne.s32.totalorder %s113, %s114
      %p126 = scmp.eq.s32.totalorder %s22, 1
      %p127 = por %p125, %p126
      %p129 = scmp.ne.s32.totalorder %s114, %s128
      %p130 = scmp.eq.s32.totalorder %s22, 0
      %p131 = por %p129, %p130
      %s133 = sadd.s32 %s132, 1
      %p136 = scmp.eq.s32.totalorder %s16, 1
      %p137 = scmp.ne.s32.totalorder %s132, %s134
      %p138 = scmp.eq.s32.totalorder %s16, 0
      %p139 = por %p137, %p138
      %p140 = scmp.ne.s32.totalorder %s132, %s134
      %p141 = scmp.eq.s32.totalorder %s21, 1
      %p142 = por %p140, %p141
      %p143 = scmp.ne.s32.totalorder %s134, %s135
      %p144 = scmp.eq.s32.totalorder %s21, 0
      %p145 = por %p143, %p144
      %p146 = scmp.ne.s32.totalorder %s134, %s135
      %p147 = scmp.eq.s32.totalorder %s22, 1
      %p148 = por %p146, %p147
      %p150 = scmp.ne.s32.totalorder %s135, %s149
      %p151 = scmp.eq.s32.totalorder %s22, 0
      %p152 = por %p150, %p151
      %s154 = sadd.s32 %s153, 1
      %p157 = scmp.eq.s32.totalorder %s16, 1
      %p158 = scmp.ne.s32.totalorder %s153, %s155
      %p159 = scmp.eq.s32.totalorder %s16, 0
      %p160 = por %p158, %p159
      %p161 = scmp.ne.s32.totalorder %s153, %s155
      %p162 = scmp.eq.s32.totalorder %s21, 1
      %p163 = por %p161, %p162
      %p164 = scmp.ne.s32.totalorder %s155, %s156
      %p165 = scmp.eq.s32.totalorder %s21, 0
      %p166 = por %p164, %p165
      %p167 = scmp.ne.s32.totalorder %s155, %s156
      %p168 = scmp.eq.s32.totalorder %s22, 1
      %p169 = por %p167, %p168
      %p171 = scmp.ne.s32.totalorder %s156, %s170
      %p172 = scmp.eq.s32.totalorder %s22, 0
      %p173 = por %p171, %p172
      %s175 = sadd.s32 %s174, 1
      %p178 = scmp.eq.s32.totalorder %s16, 1
      %p179 = scmp.ne.s32.totalorder %s174, %s176
      %p180 = scmp.eq.s32.totalorder %s16, 0
      %p181 = por %p179, %p180
      %p182 = scmp.ne.s32.totalorder %s174, %s176
      %p183 = scmp.eq.s32.totalorder %s21, 1
      %p184 = por %p182, %p183
      %p185 = scmp.ne.s32.totalorder %s176, %s177
      %p186 = scmp.eq.s32.totalorder %s21, 0
      %p187 = por %p185, %p186
      %p188 = scmp.ne.s32.totalorder %s176, %s177
      %p189 = scmp.eq.s32.totalorder %s22, 1
      %p190 = por %p188, %p189
      %p192 = scmp.ne.s32.totalorder %s177, %s191
      %p193 = scmp.eq.s32.totalorder %s22, 0
      %p194 = por %p192, %p193
      %s195 = ssub.s32 %s23, %s35
      %s196 = ssub.s32 %s24, %s31
      %s197 = sor.u32 %s195, %s196
      %p198 = scmp.eq.s32.totalorder %s197, 0
      %s200 = sadd.s32 %s199, 1
      %s201 = scalar_select %p198, %s199, %s200
      %p204 = pneg %p198
      %p205 = scmp.eq.s32.totalorder %s16, 1
      %p206 = por %p204, %p205
      %p207 = scmp.ne.s32.totalorder %s199, %s202
      %p208 = scmp.eq.s32.totalorder %s16, 0
      %p209 = por %p207, %p208
      %p210 = scmp.ne.s32.totalorder %s199, %s202
      %p211 = scmp.eq.s32.totalorder %s21, 1
      %p212 = por %p210, %p211
      %p213 = scmp.ne.s32.totalorder %s202, %s203
      %p214 = scmp.eq.s32.totalorder %s21, 0
      %p215 = por %p213, %p214
      %p216 = scmp.ne.s32.totalorder %s202, %s203
      %p217 = scmp.eq.s32.totalorder %s22, 1
      %p218 = por %p216, %p217
      %p220 = scmp.ne.s32.totalorder %s203, %s219
      %p221 = scmp.eq.s32.totalorder %s22, 0
      %p222 = por %p220, %p221
      %p223 = scmp.le.s32.totalorder 1, %s16
      %p224 = scmp.lt.s32.totalorder %s16, 3
      %p225 = pnand %p223, %p224
      %p226 = pneg %p225
      // Predicated region
      $region9: #{tpu_custom_call.1} parent=5 // pred_check
        _
      $region10: #{tpu_custom_call.1} parent=5 // pred_check_branch
        %228 = sbr.rel (%p225) target = $region12
      $region11: #{tpu_custom_call.1} parent=5 // pred_region
        %s229 = ssub.s32 %s16, 1
        // Predicated region
        $region13: #{tpu_custom_call.1} parent=11 // pred_check
          %p230 = pneg %p103
        $region14: #{tpu_custom_call.1} parent=11 // pred_check_branch
          %232 = sbr.rel (%p230) target = $region16
        $region15: #{tpu_custom_call.1} parent=11 // pred_region
          _
        $region16: #{tpu_custom_call.1} parent=11 // pred_fallthru
          _
        // Predicated region
        $region17: #{tpu_custom_call.1} parent=11 // pred_check
          %p233 = pneg %p124
        $region18: #{tpu_custom_call.1} parent=11 // pred_check_branch
          %235 = sbr.rel (%p233) target = $region20
        $region19: #{tpu_custom_call.1} parent=11 // pred_region
          _
        $region20: #{tpu_custom_call.1} parent=11 // pred_fallthru
          _
        // Predicated region
        $region21: #{tpu_custom_call.1} parent=11 // pred_check
          %p236 = pneg %p145
        $region22: #{tpu_custom_call.1} parent=11 // pred_check_branch
          %238 = sbr.rel (%p236) target = $region24
        $region23: #{tpu_custom_call.1} parent=11 // pred_region
          _
        $region24: #{tpu_custom_call.1} parent=11 // pred_fallthru
          _
        // Predicated region
        $region25: #{tpu_custom_call.1} parent=11 // pred_check
          %p239 = pneg %p166
        $region26: #{tpu_custom_call.1} parent=11 // pred_check_branch
          %241 = sbr.rel (%p239) target = $region28
        $region27: #{tpu_custom_call.1} parent=11 // pred_region
          _
        $region28: #{tpu_custom_call.1} parent=11 // pred_fallthru
          _
        // Predicated region
        $region29: #{tpu_custom_call.1} parent=11 // pred_check
          %p242 = pneg %p187
        $region30: #{tpu_custom_call.1} parent=11 // pred_check_branch
          %244 = sbr.rel (%p242) target = $region32
        $region31: #{tpu_custom_call.1} parent=11 // pred_region
          _
        $region32: #{tpu_custom_call.1} parent=11 // pred_fallthru
          _
      $region12: #{tpu_custom_call.1} parent=5 // pred_fallthru
        _
      %p245 = scmp.lt.s32.totalorder %s16, 2
      // Predicated region
      $region33: #{tpu_custom_call.1} parent=5 // pred_check
        %p246 = pneg %p245
      $region34: #{tpu_custom_call.1} parent=5 // pred_check_branch
        %248 = sbr.rel (%p246) target = $region36
      $region35: #{tpu_custom_call.1} parent=5 // pred_region
        // Predicated region
        $region37: #{tpu_custom_call.1} parent=35 // pred_check
          %p249 = pneg %p50
        $region38: #{tpu_custom_call.1} parent=35 // pred_check_branch
          %251 = sbr.rel (%p249) target = $region40
        $region39: #{tpu_custom_call.1} parent=35 // pred_region
          %s252 = smul.u32 2, %s24
          %p253 = scmp.lt.s32.totalorder %s23, 1
          %s254 = scalar_select %p253, %s23, 1
          %p255 = scmp.lt.s32.totalorder %s252, 1
          %s256 = scalar_select %p255, %s252, 1
          %s257 = smul.addr %s254, 2
          %s258 = sadd.s32 %s256, %s257
          %s259 = smul.addr %s258, 4
          %s260 = scalar_lea.vmem %s0, %s259
          %s261 = smul.u32 2, %s24
        $region40: #{tpu_custom_call.1} parent=35 // pred_fallthru
          _
        // Predicated region
        $region41: #{tpu_custom_call.1} parent=35 // pred_check
          %p262 = pneg %p76
        $region42: #{tpu_custom_call.1} parent=35 // pred_check_branch
          %264 = sbr.rel (%p262) target = $region44
        $region43: #{tpu_custom_call.1} parent=35 // pred_region
          %p265 = scmp.lt.s32.totalorder %s23, 1
          %s266 = scalar_select %p265, %s23, 1
          %s267 = smul.addr %s266, 4
          %s268 = scalar_lea.vmem %s1, %s267
        $region44: #{tpu_custom_call.1} parent=35 // pred_fallthru
          _
      $region36: #{tpu_custom_call.1} parent=5 // pred_fallthru
        _
      %p269 = scmp.le.s32.totalorder 1, %s16
      %p270 = scmp.lt.s32.totalorder %s16, 3
      %p271 = pnand %p269, %p270
      %p272 = pneg %p271
      // Predicated region
      $region45: #{tpu_custom_call.1} parent=5 // pred_check
        _
      $region46: #{tpu_custom_call.1} parent=5 // pred_check_branch
        %274 = sbr.rel (%p271) target = $region48
      $region47: #{tpu_custom_call.1} parent=5 // pred_region
        %s275 = ssub.s32 %s16, 1
        %s276 = smul.u32 2, %s26
        %p277 = scmp.lt.s32.totalorder %s25, 1
        %s278 = scalar_select %p277, %s25, 1
        %p279 = scmp.lt.s32.totalorder %s276, 1
        %s280 = scalar_select %p279, %s276, 1
        %s281 = smul.addr %s278, 2
        %s282 = sadd.s32 %s280, %s281
        %s283 = smul.addr %s282, 4
        %s284 = scalar_lea.vmem %s0, %s283
        %p285 = pneg %p56
        %p286 = pneg %p53
        %p287 = scmp.lt.s32.totalorder %s25, 1
        %s288 = scalar_select %p287, %s25, 1
        %s289 = smul.addr %s288, 4
        %s290 = scalar_lea.vmem %s1, %s289
        %p291 = pneg %p82
        %p292 = pneg %p79
        %p293 = pneg %p103
        %p294 = pneg %p100
        %p295 = pneg %p124
        %p296 = pneg %p121
        %p297 = pneg %p145
        %p298 = pneg %p142
        %p299 = pneg %p166
        %p300 = pneg %p163
        %p301 = pneg %p187
        %p302 = pneg %p184
        %p303 = pneg %p215
        %p304 = pneg %p212
        %s305 = sand.u32 %s202, 1
        %s306 = scalar_lea.sflag [#allocation5], %s305
        %s307 = sand.u32 %s202, 1
        %s308 = smul.addr %s307, 16
        %s309 = scalar_lea.vmem [#allocation4], %s308
        %s310 = smul.u32 2, %s26
        %p311 = scmp.lt.s32.totalorder %s25, 1
        %s312 = scalar_select %p311, %s25, 1
        %p313 = scmp.lt.s32.totalorder %s310, 1
        %s314 = scalar_select %p313, %s310, 1
        %s315 = smul.addr %s312, 2
        %s316 = sadd.s32 %s314, %s315
        %s317 = smul.addr %s316, 4
        %s318 = scalar_lea.vmem %s0, %s317
        %s319 = smul.u32 2, %s26
        %p320 = scmp.lt.s32.totalorder %s25, 1
        %s321 = scalar_select %p320, %s25, 1
        %s322 = smul.addr %s321, 4
        %s323 = scalar_lea.vmem %s1, %s322
        %s324 = smul.u32 2, %s26
        %p326 = scmp.eq.s32.totalorder %s26, 0
        // Predicated region
        $region49: #{tpu_custom_call.1} parent=47 // pred_check
          %p327 = pneg %p326
        $region50: #{tpu_custom_call.1} parent=47 // pred_check_branch
          %329 = sbr.rel (%p327) target = $region52
        $region51: #{tpu_custom_call.1} parent=47 // pred_region
          %v330 = vld [vmem:[%s323] sm:$0xf]
          %v331 = vld [vmem:[%s3] sm:$0xf]
          %v332 = vld [vmem:[%s3 + $0x4] sm:$0xf]
          %v333 = vld [vmem:[%s3 + $0x8] sm:$0xf]
          %v334 = vld [vmem:[%s3 + $0xc] sm:$0xf]
          %v335 = vld [vmem:[%s3 + $0x10] sm:$0xf]
          %v336 = vld [vmem:[%s3 + $0x14] sm:$0xf]
          %v337 = vld [vmem:[%s3 + $0x18] sm:$0xf]
          %v338 = vld [vmem:[%s3 + $0x1c] sm:$0xf]
          %v339 = vld [vmem:[%s3 + $0x20] sm:$0xf]
          %v340 = vld [vmem:[%s3 + $0x24] sm:$0xf]
          %v341 = vld [vmem:[%s3 + $0x28] sm:$0xf]
          %v342 = vld [vmem:[%s3 + $0x2c] sm:$0xf]
          %v343 = vld [vmem:[%s3 + $0x30] sm:$0xf]
          %v344 = vld [vmem:[%s3 + $0x34] sm:$0xf]
          %v345 = vld [vmem:[%s3 + $0x38] sm:$0xf]
          %v346 = vld [vmem:[%s3 + $0x3c] sm:$0xf]
          %v351 = vunpack.c.l.b16 %v331
          %v352 = vunpack.c.l.b16 %v332
          %v353 = vunpack.c.l.b16 %v333
          %v354 = vunpack.c.l.b16 %v334
          %v355 = vpack.c.b16 %v352, %v351
          %v356 = vpack.c.b16 %v354, %v353
          %vm359 = vcmask 261120
          %v361 = vsel %vm359, %v330, 0
          %363 = vmatprep.subr.bf16.mxu0 0
          %364 = vmatpush1.bf16.msra.mxu0 0
          %365 = vmatprep.subr.bf16.mxu0 0
          %366 = vmatpush1.bf16.msra.mxu0 0
          %367 = vmatprep.subr.bf16.mxu0 0
          %368 = vmatpush1.bf16.msra.mxu0 0
          %369 = vmatprep.subr.bf16.mxu0 0
          %370 = vmatpush1.bf16.msra.mxu0 0
          %371 = vmatprep.subr.bf16.mxu0 0
          %372 = vmatpush1.bf16.msra.mxu0 0
          %373 = vmatprep.subr.bf16.mxu0 0
          %374 = vmatpush1.bf16.msra.mxu0 0
          %375 = vmatprep.subr.bf16.mxu0 0
          %376 = vmatpush1.bf16.msra.mxu0 %v356
          %377 = vmatprep.subr.bf16.mxu0 0
          %378 = vmatpush1.bf16.msra.mxu0 %v355
          %379 = vmatprep.subr.bf16.mxu0 0
          %380 = vmatpush2.bf16.msra.mxu0 0
          %381 = vmatprep.subr.bf16.mxu0 0
          %382 = vmatpush2.bf16.msra.mxu0 0
          %383 = vmatprep.subr.bf16.mxu0 0
          %384 = vmatpush2.bf16.msra.mxu0 0
          %385 = vmatprep.subr.bf16.mxu0 0
          %386 = vmatpush2.bf16.msra.mxu0 0
          %387 = vmatprep.subr.bf16.mxu0 0
          %388 = vmatpush2.bf16.msra.mxu0 0
          %389 = vmatprep.subr.bf16.mxu0 0
          %390 = vmatpush2.bf16.msra.mxu0 0
          %391 = vmatprep.subr.bf16.mxu0 0
          %392 = vmatpush2.bf16.msra.mxu0 0
          %393 = vmatprep.subr.bf16.mxu0 0
          %394 = vmatpush2.bf16.msra.mxu0 0
          %395 = vmatprep.mubr.bf16.mxu0 0
          %396 = vmatmul.mubr.bf16.gmra.mxu0 %v361
          %v397 = vpop.f32.mrf.mxu0
          %v398 = vadd.f32 0.0, %v397
          %v399 = vpop.f32.mrf.mxu0
          %v400 = vpop.f32.mrf.mxu0
          %v401 = vpop.f32.mrf.mxu0
          %402 = vdwg.mxu0
          %v407 = vunpack.c.l.b16 %v335
          %v408 = vunpack.c.l.b16 %v336
          %v409 = vunpack.c.l.b16 %v337
          %v410 = vunpack.c.l.b16 %v338
          %v411 = vpack.c.b16 %v408, %v407
          %v412 = vpack.c.b16 %v410, %v409
          %415 = vmatprep.subr.bf16.mxu0 0
          %416 = vmatpush1.bf16.msra.mxu0 0
          %417 = vmatprep.subr.bf16.mxu0 0
          %418 = vmatpush1.bf16.msra.mxu0 0
          %419 = vmatprep.subr.bf16.mxu0 0
          %420 = vmatpush1.bf16.msra.mxu0 0
          %421 = vmatprep.subr.bf16.mxu0 0
          %422 = vmatpush1.bf16.msra.mxu0 0
          %423 = vmatprep.subr.bf16.mxu0 0
          %424 = vmatpush1.bf16.msra.mxu0 0
          %425 = vmatprep.subr.bf16.mxu0 0
          %426 = vmatpush1.bf16.msra.mxu0 0
          %427 = vmatprep.subr.bf16.mxu0 0
          %428 = vmatpush1.bf16.msra.mxu0 %v412
          %429 = vmatprep.subr.bf16.mxu0 0
          %430 = vmatpush1.bf16.msra.mxu0 %v411
          %431 = vmatprep.subr.bf16.mxu0 0
          %432 = vmatpush2.bf16.msra.mxu0 0
          %433 = vmatprep.subr.bf16.mxu0 0
          %434 = vmatpush2.bf16.msra.mxu0 0
          %435 = vmatprep.subr.bf16.mxu0 0
          %436 = vmatpush2.bf16.msra.mxu0 0
          %437 = vmatprep.subr.bf16.mxu0 0
          %438 = vmatpush2.bf16.msra.mxu0 0
          %439 = vmatprep.subr.bf16.mxu0 0
          %440 = vmatpush2.bf16.msra.mxu0 0
          %441 = vmatprep.subr.bf16.mxu0 0
          %442 = vmatpush2.bf16.msra.mxu0 0
          %443 = vmatprep.subr.bf16.mxu0 0
          %444 = vmatpush2.bf16.msra.mxu0 0
          %445 = vmatprep.subr.bf16.mxu0 0
          %446 = vmatpush2.bf16.msra.mxu0 0
          %447 = vmatprep.mubr.bf16.mxu0 0
          %448 = vmatmul.mubr.bf16.gmra.mxu0 %v361
          %v449 = vpop.f32.mrf.mxu0
          %v450 = vadd.f32 0.0, %v449
          %v451 = vpop.f32.mrf.mxu0
          %v452 = vpop.f32.mrf.mxu0
          %v453 = vpop.f32.mrf.mxu0
          %454 = vdwg.mxu0
          %v459 = vunpack.c.l.b16 %v339
          %v460 = vunpack.c.l.b16 %v340
          %v461 = vunpack.c.l.b16 %v341
          %v462 = vunpack.c.l.b16 %v342
          %v463 = vpack.c.b16 %v460, %v459
          %v464 = vpack.c.b16 %v462, %v461
          %467 = vmatprep.subr.bf16.mxu0 0
          %468 = vmatpush1.bf16.msra.mxu0 0
          %469 = vmatprep.subr.bf16.mxu0 0
          %470 = vmatpush1.bf16.msra.mxu0 0
          %471 = vmatprep.subr.bf16.mxu0 0
          %472 = vmatpush1.bf16.msra.mxu0 0
          %473 = vmatprep.subr.bf16.mxu0 0
          %474 = vmatpush1.bf16.msra.mxu0 0
          %475 = vmatprep.subr.bf16.mxu0 0
          %476 = vmatpush1.bf16.msra.mxu0 0
          %477 = vmatprep.subr.bf16.mxu0 0
          %478 = vmatpush1.bf16.msra.mxu0 0
          %479 = vmatprep.subr.bf16.mxu0 0
          %480 = vmatpush1.bf16.msra.mxu0 %v464
          %481 = vmatprep.subr.bf16.mxu0 0
          %482 = vmatpush1.bf16.msra.mxu0 %v463
          %483 = vmatprep.subr.bf16.mxu0 0
          %484 = vmatpush2.bf16.msra.mxu0 0
          %485 = vmatprep.subr.bf16.mxu0 0
          %486 = vmatpush2.bf16.msra.mxu0 0
          %487 = vmatprep.subr.bf16.mxu0 0
          %488 = vmatpush2.bf16.msra.mxu0 0
          %489 = vmatprep.subr.bf16.mxu0 0
          %490 = vmatpush2.bf16.msra.mxu0 0
          %491 = vmatprep.subr.bf16.mxu0 0
          %492 = vmatpush2.bf16.msra.mxu0 0
          %493 = vmatprep.subr.bf16.mxu0 0
          %494 = vmatpush2.bf16.msra.mxu0 0
          %495 = vmatprep.subr.bf16.mxu0 0
          %496 = vmatpush2.bf16.msra.mxu0 0
          %497 = vmatprep.subr.bf16.mxu0 0
          %498 = vmatpush2.bf16.msra.mxu0 0
          %499 = vmatprep.mubr.bf16.mxu0 0
          %500 = vmatmul.mubr.bf16.gmra.mxu0 %v361
          %v501 = vpop.f32.mrf.mxu0
          %v502 = vadd.f32 0.0, %v501
          %v503 = vpop.f32.mrf.mxu0
          %v504 = vpop.f32.mrf.mxu0
          %v505 = vpop.f32.mrf.mxu0
          %506 = vdwg.mxu0
          %v511 = vunpack.c.l.b16 %v343
          %v512 = vunpack.c.l.b16 %v344
          %v513 = vunpack.c.l.b16 %v345
          %v514 = vunpack.c.l.b16 %v346
          %v515 = vpack.c.b16 %v512, %v511
          %v516 = vpack.c.b16 %v514, %v513
          %519 = vmatprep.subr.bf16.mxu0 0
          %520 = vmatpush1.bf16.msra.mxu0 0
          %521 = vmatprep.subr.bf16.mxu0 0
          %522 = vmatpush1.bf16.msra.mxu0 0
          %523 = vmatprep.subr.bf16.mxu0 0
          %524 = vmatpush1.bf16.msra.mxu0 0
          %525 = vmatprep.subr.bf16.mxu0 0
          %526 = vmatpush1.bf16.msra.mxu0 0
          %527 = vmatprep.subr.bf16.mxu0 0
          %528 = vmatpush1.bf16.msra.mxu0 0
          %529 = vmatprep.subr.bf16.mxu0 0
          %530 = vmatpush1.bf16.msra.mxu0 0
          %531 = vmatprep.subr.bf16.mxu0 0
          %532 = vmatpush1.bf16.msra.mxu0 %v516
          %533 = vmatprep.subr.bf16.mxu0 0
          %534 = vmatpush1.bf16.msra.mxu0 %v515
          %535 = vmatprep.subr.bf16.mxu0 0
          %536 = vmatpush2.bf16.msra.mxu0 0
          %537 = vmatprep.subr.bf16.mxu0 0
          %538 = vmatpush2.bf16.msra.mxu0 0
          %539 = vmatprep.subr.bf16.mxu0 0
          %540 = vmatpush2.bf16.msra.mxu0 0
          %541 = vmatprep.subr.bf16.mxu0 0
          %542 = vmatpush2.bf16.msra.mxu0 0
          %543 = vmatprep.subr.bf16.mxu0 0
          %544 = vmatpush2.bf16.msra.mxu0 0
          %545 = vmatprep.subr.bf16.mxu0 0
          %546 = vmatpush2.bf16.msra.mxu0 0
          %547 = vmatprep.subr.bf16.mxu0 0
          %548 = vmatpush2.bf16.msra.mxu0 0
          %549 = vmatprep.subr.bf16.mxu0 0
          %550 = vmatpush2.bf16.msra.mxu0 0
          %551 = vmatprep.mubr.bf16.mxu0 0
          %552 = vmatmul.mubr.bf16.gmra.mxu0 %v361
          %v553 = vpop.f32.mrf.mxu0
          %v554 = vadd.f32 0.0, %v553
          %v555 = vpop.f32.mrf.mxu0
          %v556 = vpop.f32.mrf.mxu0
          %v557 = vpop.f32.mrf.mxu0
          %558 = vdwg.mxu0
          %v559 = vpack.c.bf16 %v398, %v398
          %v560 = vpack.c.bf16 %v450, %v450
          %v561 = vpack.c.bf16 %v502, %v502
          %v562 = vpack.c.bf16 %v554, %v554
          %vm563 = vcmask 60416
          %564 = vst.msk [vmem:[#allocation2] sm:$0xf] %vm563, %v559
          %565 = vst.msk [vmem:[#allocation2 + $0x4] sm:$0xf] %vm563, %v560
          %566 = vst.msk [vmem:[#allocation2 + $0x8] sm:$0xf] %vm563, %v561
          %567 = vst.msk [vmem:[#allocation2 + $0xc] sm:$0xf] %vm563, %v562
          %v568 = vld [vmem:[%s4] sm:$0xf]
          %v569 = vld [vmem:[%s4 + $0x4] sm:$0xf]
          %v570 = vld [vmem:[%s4 + $0x8] sm:$0xf]
          %v571 = vld [vmem:[%s4 + $0xc] sm:$0xf]
          %v572 = vld [vmem:[%s4 + $0x10] sm:$0xf]
          %v573 = vld [vmem:[%s4 + $0x14] sm:$0xf]
          %v574 = vld [vmem:[%s4 + $0x18] sm:$0xf]
          %v575 = vld [vmem:[%s4 + $0x1c] sm:$0xf]
          %v576 = vld [vmem:[%s4 + $0x20] sm:$0xf]
          %v577 = vld [vmem:[%s4 + $0x24] sm:$0xf]
          %v578 = vld [vmem:[%s4 + $0x28] sm:$0xf]
          %v579 = vld [vmem:[%s4 + $0x2c] sm:$0xf]
          %v580 = vld [vmem:[%s4 + $0x30] sm:$0xf]
          %v581 = vld [vmem:[%s4 + $0x34] sm:$0xf]
          %v582 = vld [vmem:[%s4 + $0x38] sm:$0xf]
          %v583 = vld [vmem:[%s4 + $0x3c] sm:$0xf]
          %v588 = vunpack.c.l.b16 %v568
          %v589 = vunpack.c.l.b16 %v569
          %v590 = vunpack.c.l.b16 %v570
          %v591 = vunpack.c.l.b16 %v571
          %v592 = vpack.c.b16 %v589, %v588
          %v593 = vpack.c.b16 %v591, %v590
          %596 = vmatprep.subr.bf16.mxu0 0
          %597 = vmatpush1.bf16.msra.mxu0 0
          %598 = vmatprep.subr.bf16.mxu0 0
          %599 = vmatpush1.bf16.msra.mxu0 0
          %600 = vmatprep.subr.bf16.mxu0 0
          %601 = vmatpush1.bf16.msra.mxu0 0
          %602 = vmatprep.subr.bf16.mxu0 0
          %603 = vmatpush1.bf16.msra.mxu0 0
          %604 = vmatprep.subr.bf16.mxu0 0
          %605 = vmatpush1.bf16.msra.mxu0 0
          %606 = vmatprep.subr.bf16.mxu0 0
          %607 = vmatpush1.bf16.msra.mxu0 0
          %608 = vmatprep.subr.bf16.mxu0 0
          %609 = vmatpush1.bf16.msra.mxu0 %v593
          %610 = vmatprep.subr.bf16.mxu0 0
          %611 = vmatpush1.bf16.msra.mxu0 %v592
          %612 = vmatprep.subr.bf16.mxu0 0
          %613 = vmatpush2.bf16.msra.mxu0 0
          %614 = vmatprep.subr.bf16.mxu0 0
          %615 = vmatpush2.bf16.msra.mxu0 0
          %616 = vmatprep.subr.bf16.mxu0 0
          %617 = vmatpush2.bf16.msra.mxu0 0
          %618 = vmatprep.subr.bf16.mxu0 0
          %619 = vmatpush2.bf16.msra.mxu0 0
          %620 = vmatprep.subr.bf16.mxu0 0
          %621 = vmatpush2.bf16.msra.mxu0 0
          %622 = vmatprep.subr.bf16.mxu0 0
          %623 = vmatpush2.bf16.msra.mxu0 0
          %624 = vmatprep.subr.bf16.mxu0 0
          %625 = vmatpush2.bf16.msra.mxu0 0
          %626 = vmatprep.subr.bf16.mxu0 0
          %627 = vmatpush2.bf16.msra.mxu0 0
          %628 = vmatprep.mubr.bf16.mxu0 0
          %629 = vmatmul.mubr.bf16.gmra.mxu0 %v361
          %v630 = vpop.f32.mrf.mxu0
          %v631 = vadd.f32 0.0, %v630
          %v632 = vpop.f32.mrf.mxu0
          %v633 = vpop.f32.mrf.mxu0
          %v634 = vpop.f32.mrf.mxu0
          %635 = vdwg.mxu0
          %v640 = vunpack.c.l.b16 %v572
          %v641 = vunpack.c.l.b16 %v573
          %v642 = vunpack.c.l.b16 %v574
          %v643 = vunpack.c.l.b16 %v575
          %v644 = vpack.c.b16 %v641, %v640
          %v645 = vpack.c.b16 %v643, %v642
          %648 = vmatprep.subr.bf16.mxu0 0
          %649 = vmatpush1.bf16.msra.mxu0 0
          %650 = vmatprep.subr.bf16.mxu0 0
          %651 = vmatpush1.bf16.msra.mxu0 0
          %652 = vmatprep.subr.bf16.mxu0 0
          %653 = vmatpush1.bf16.msra.mxu0 0
          %654 = vmatprep.subr.bf16.mxu0 0
          %655 = vmatpush1.bf16.msra.mxu0 0
          %656 = vmatprep.subr.bf16.mxu0 0
          %657 = vmatpush1.bf16.msra.mxu0 0
          %658 = vmatprep.subr.bf16.mxu0 0
          %659 = vmatpush1.bf16.msra.mxu0 0
          %660 = vmatprep.subr.bf16.mxu0 0
          %661 = vmatpush1.bf16.msra.mxu0 %v645
          %662 = vmatprep.subr.bf16.mxu0 0
          %663 = vmatpush1.bf16.msra.mxu0 %v644
          %664 = vmatprep.subr.bf16.mxu0 0
          %665 = vmatpush2.bf16.msra.mxu0 0
          %666 = vmatprep.subr.bf16.mxu0 0
          %667 = vmatpush2.bf16.msra.mxu0 0
          %668 = vmatprep.subr.bf16.mxu0 0
          %669 = vmatpush2.bf16.msra.mxu0 0
          %670 = vmatprep.subr.bf16.mxu0 0
          %671 = vmatpush2.bf16.msra.mxu0 0
          %672 = vmatprep.subr.bf16.mxu0 0
          %673 = vmatpush2.bf16.msra.mxu0 0
          %674 = vmatprep.subr.bf16.mxu0 0
          %675 = vmatpush2.bf16.msra.mxu0 0
          %676 = vmatprep.subr.bf16.mxu0 0
          %677 = vmatpush2.bf16.msra.mxu0 0
          %678 = vmatprep.subr.bf16.mxu0 0
          %679 = vmatpush2.bf16.msra.mxu0 0
          %680 = vmatprep.mubr.bf16.mxu0 0
          %681 = vmatmul.mubr.bf16.gmra.mxu0 %v361
          %v682 = vpop.f32.mrf.mxu0
          %v683 = vadd.f32 0.0, %v682
          %v684 = vpop.f32.mrf.mxu0
          %v685 = vpop.f32.mrf.mxu0
          %v686 = vpop.f32.mrf.mxu0
          %687 = vdwg.mxu0
          %v692 = vunpack.c.l.b16 %v576
          %v693 = vunpack.c.l.b16 %v577
          %v694 = vunpack.c.l.b16 %v578
          %v695 = vunpack.c.l.b16 %v579
          %v696 = vpack.c.b16 %v693, %v692
          %v697 = vpack.c.b16 %v695, %v694
          %700 = vmatprep.subr.bf16.mxu0 0
          %701 = vmatpush1.bf16.msra.mxu0 0
          %702 = vmatprep.subr.bf16.mxu0 0
          %703 = vmatpush1.bf16.msra.mxu0 0
          %704 = vmatprep.subr.bf16.mxu0 0
          %705 = vmatpush1.bf16.msra.mxu0 0
          %706 = vmatprep.subr.bf16.mxu0 0
          %707 = vmatpush1.bf16.msra.mxu0 0
          %708 = vmatprep.subr.bf16.mxu0 0
          %709 = vmatpush1.bf16.msra.mxu0 0
          %710 = vmatprep.subr.bf16.mxu0 0
          %711 = vmatpush1.bf16.msra.mxu0 0
          %712 = vmatprep.subr.bf16.mxu0 0
          %713 = vmatpush1.bf16.msra.mxu0 %v697
          %714 = vmatprep.subr.bf16.mxu0 0
          %715 = vmatpush1.bf16.msra.mxu0 %v696
          %716 = vmatprep.subr.bf16.mxu0 0
          %717 = vmatpush2.bf16.msra.mxu0 0
          %718 = vmatprep.subr.bf16.mxu0 0
          %719 = vmatpush2.bf16.msra.mxu0 0
          %720 = vmatprep.subr.bf16.mxu0 0
          %721 = vmatpush2.bf16.msra.mxu0 0
          %722 = vmatprep.subr.bf16.mxu0 0
          %723 = vmatpush2.bf16.msra.mxu0 0
          %724 = vmatprep.subr.bf16.mxu0 0
          %725 = vmatpush2.bf16.msra.mxu0 0
          %726 = vmatprep.subr.bf16.mxu0 0
          %727 = vmatpush2.bf16.msra.mxu0 0
          %728 = vmatprep.subr.bf16.mxu0 0
          %729 = vmatpush2.bf16.msra.mxu0 0
          %730 = vmatprep.subr.bf16.mxu0 0
          %731 = vmatpush2.bf16.msra.mxu0 0
          %732 = vmatprep.mubr.bf16.mxu0 0
          %733 = vmatmul.mubr.bf16.gmra.mxu0 %v361
          %v734 = vpop.f32.mrf.mxu0
          %v735 = vadd.f32 0.0, %v734
          %v736 = vpop.f32.mrf.mxu0
          %v737 = vpop.f32.mrf.mxu0
          %v738 = vpop.f32.mrf.mxu0
          %739 = vdwg.mxu0
          %v744 = vunpack.c.l.b16 %v580
          %v745 = vunpack.c.l.b16 %v581
          %v746 = vunpack.c.l.b16 %v582
          %v747 = vunpack.c.l.b16 %v583
          %v748 = vpack.c.b16 %v745, %v744
          %v749 = vpack.c.b16 %v747, %v746
          %752 = vmatprep.subr.bf16.mxu0 0
          %753 = vmatpush1.bf16.msra.mxu0 0
          %754 = vmatprep.subr.bf16.mxu0 0
          %755 = vmatpush1.bf16.msra.mxu0 0
          %756 = vmatprep.subr.bf16.mxu0 0
          %757 = vmatpush1.bf16.msra.mxu0 0
          %758 = vmatprep.subr.bf16.mxu0 0
          %759 = vmatpush1.bf16.msra.mxu0 0
          %760 = vmatprep.subr.bf16.mxu0 0
          %761 = vmatpush1.bf16.msra.mxu0 0
          %762 = vmatprep.subr.bf16.mxu0 0
          %763 = vmatpush1.bf16.msra.mxu0 0
          %764 = vmatprep.subr.bf16.mxu0 0
          %765 = vmatpush1.bf16.msra.mxu0 %v749
          %766 = vmatprep.subr.bf16.mxu0 0
          %767 = vmatpush1.bf16.msra.mxu0 %v748
          %768 = vmatprep.subr.bf16.mxu0 0
          %769 = vmatpush2.bf16.msra.mxu0 0
          %770 = vmatprep.subr.bf16.mxu0 0
          %771 = vmatpush2.bf16.msra.mxu0 0
          %772 = vmatprep.subr.bf16.mxu0 0
          %773 = vmatpush2.bf16.msra.mxu0 0
          %774 = vmatprep.subr.bf16.mxu0 0
          %775 = vmatpush2.bf16.msra.mxu0 0
          %776 = vmatprep.subr.bf16.mxu0 0
          %777 = vmatpush2.bf16.msra.mxu0 0
          %778 = vmatprep.subr.bf16.mxu0 0
          %779 = vmatpush2.bf16.msra.mxu0 0
          %780 = vmatprep.subr.bf16.mxu0 0
          %781 = vmatpush2.bf16.msra.mxu0 0
          %782 = vmatprep.subr.bf16.mxu0 0
          %783 = vmatpush2.bf16.msra.mxu0 0
          %784 = vmatprep.mubr.bf16.mxu0 0
          %785 = vmatmul.mubr.bf16.gmra.mxu0 %v361
          %v786 = vpop.f32.mrf.mxu0
          %v787 = vadd.f32 0.0, %v786
          %v788 = vpop.f32.mrf.mxu0
          %v789 = vpop.f32.mrf.mxu0
          %v790 = vpop.f32.mrf.mxu0
          %791 = vdwg.mxu0
          %v792 = vpack.c.bf16 %v631, %v631
          %v793 = vpack.c.bf16 %v683, %v683
          %v794 = vpack.c.bf16 %v735, %v735
          %v795 = vpack.c.bf16 %v787, %v787
          %796 = vst.msk [vmem:[#allocation3] sm:$0xf] %vm563, %v792
          %797 = vst.msk [vmem:[#allocation3 + $0x4] sm:$0xf] %vm563, %v793
          %798 = vst.msk [vmem:[#allocation3 + $0x8] sm:$0xf] %vm563, %v794
          %799 = vst.msk [vmem:[#allocation3 + $0xc] sm:$0xf] %vm563, %v795
        $region52: #{tpu_custom_call.1} parent=47 // pred_fallthru
          _
        %v800 = vld [vmem:[%s318] sm:$0xf]
        %v801 = vld [vmem:[%s318 + $0x4] sm:$0xf]
        %v802 = vld [vmem:[%s2] sm:$0xf]
        %v803 = vld [vmem:[%s2 + $0x4] sm:$0xf]
        %v804 = vld [vmem:[%s2 + $0x8] sm:$0xf]
        %v805 = vld [vmem:[%s2 + $0xc] sm:$0xf]
        %v806 = vld [vmem:[%s2 + $0x10] sm:$0xf]
        %v807 = vld [vmem:[%s2 + $0x14] sm:$0xf]
        %v808 = vld [vmem:[%s2 + $0x18] sm:$0xf]
        %v809 = vld [vmem:[%s2 + $0x1c] sm:$0xf]
        %v810 = vld [vmem:[%s2 + $0x20] sm:$0xf]
        %v811 = vld [vmem:[%s2 + $0x24] sm:$0xf]
        %v812 = vld [vmem:[%s2 + $0x28] sm:$0xf]
        %v813 = vld [vmem:[%s2 + $0x2c] sm:$0xf]
        %v814 = vld [vmem:[%s2 + $0x30] sm:$0xf]
        %v815 = vld [vmem:[%s2 + $0x34] sm:$0xf]
        %v816 = vld [vmem:[%s2 + $0x38] sm:$0xf]
        %v817 = vld [vmem:[%s2 + $0x3c] sm:$0xf]
        %v820 = vunpack.c.l.b16 %v800
        %v821 = vunpack.c.l.b16 %v801
        %v822 = vpack.c.b16 %v821, %v820
        %v827 = vunpack.c.l.b16 %v802
        %v828 = vunpack.c.l.b16 %v803
        %v829 = vunpack.c.l.b16 %v804
        %v830 = vunpack.c.l.b16 %v805
        %v831 = vpack.c.b16 %v828, %v827
        %v832 = vpack.c.b16 %v830, %v829
        %vm835 = vcmask 261120
        %v837 = vsel %vm835, %v822, 0
        %839 = vmatprep.subr.bf16.mxu0 0
        %840 = vmatpush1.bf16.msra.mxu0 0
        %841 = vmatprep.subr.bf16.mxu0 0
        %842 = vmatpush1.bf16.msra.mxu0 0
        %843 = vmatprep.subr.bf16.mxu0 0
        %844 = vmatpush1.bf16.msra.mxu0 0
        %845 = vmatprep.subr.bf16.mxu0 0
        %846 = vmatpush1.bf16.msra.mxu0 0
        %847 = vmatprep.subr.bf16.mxu0 0
        %848 = vmatpush1.bf16.msra.mxu0 0
        %849 = vmatprep.subr.bf16.mxu0 0
        %850 = vmatpush1.bf16.msra.mxu0 0
        %851 = vmatprep.subr.bf16.mxu0 0
        %852 = vmatpush1.bf16.msra.mxu0 %v832
        %853 = vmatprep.subr.bf16.mxu0 0
        %854 = vmatpush1.bf16.msra.mxu0 %v831
        %855 = vmatprep.subr.bf16.mxu0 0
        %856 = vmatpush2.bf16.msra.mxu0 0
        %857 = vmatprep.subr.bf16.mxu0 0
        %858 = vmatpush2.bf16.msra.mxu0 0
        %859 = vmatprep.subr.bf16.mxu0 0
        %860 = vmatpush2.bf16.msra.mxu0 0
        %861 = vmatprep.subr.bf16.mxu0 0
        %862 = vmatpush2.bf16.msra.mxu0 0
        %863 = vmatprep.subr.bf16.mxu0 0
        %864 = vmatpush2.bf16.msra.mxu0 0
        %865 = vmatprep.subr.bf16.mxu0 0
        %866 = vmatpush2.bf16.msra.mxu0 0
        %867 = vmatprep.subr.bf16.mxu0 0
        %868 = vmatpush2.bf16.msra.mxu0 0
        %869 = vmatprep.subr.bf16.mxu0 0
        %870 = vmatpush2.bf16.msra.mxu0 0
        %871 = vmatprep.mubr.bf16.mxu0 0
        %872 = vmatmul.mubr.bf16.gmra.mxu0 %v837
        %v873 = vpop.f32.mrf.mxu0
        %v874 = vadd.f32 0.0, %v873
        %v875 = vpop.f32.mrf.mxu0
        %v876 = vpop.f32.mrf.mxu0
        %v877 = vadd.f32 0.0, %v876
        %v878 = vpop.f32.mrf.mxu0
        %879 = vdwg.mxu0
        %v884 = vunpack.c.l.b16 %v806
        %v885 = vunpack.c.l.b16 %v807
        %v886 = vunpack.c.l.b16 %v808
        %v887 = vunpack.c.l.b16 %v809
        %v888 = vpack.c.b16 %v885, %v884
        %v889 = vpack.c.b16 %v887, %v886
        %892 = vmatprep.subr.bf16.mxu0 0
        %893 = vmatpush1.bf16.msra.mxu0 0
        %894 = vmatprep.subr.bf16.mxu0 0
        %895 = vmatpush1.bf16.msra.mxu0 0
        %896 = vmatprep.subr.bf16.mxu0 0
        %897 = vmatpush1.bf16.msra.mxu0 0
        %898 = vmatprep.subr.bf16.mxu0 0
        %899 = vmatpush1.bf16.msra.mxu0 0
        %900 = vmatprep.subr.bf16.mxu0 0
        %901 = vmatpush1.bf16.msra.mxu0 0
        %902 = vmatprep.subr.bf16.mxu0 0
        %903 = vmatpush1.bf16.msra.mxu0 0
        %904 = vmatprep.subr.bf16.mxu0 0
        %905 = vmatpush1.bf16.msra.mxu0 %v889
        %906 = vmatprep.subr.bf16.mxu0 0
        %907 = vmatpush1.bf16.msra.mxu0 %v888
        %908 = vmatprep.subr.bf16.mxu0 0
        %909 = vmatpush2.bf16.msra.mxu0 0
        %910 = vmatprep.subr.bf16.mxu0 0
        %911 = vmatpush2.bf16.msra.mxu0 0
        %912 = vmatprep.subr.bf16.mxu0 0
        %913 = vmatpush2.bf16.msra.mxu0 0
        %914 = vmatprep.subr.bf16.mxu0 0
        %915 = vmatpush2.bf16.msra.mxu0 0
        %916 = vmatprep.subr.bf16.mxu0 0
        %917 = vmatpush2.bf16.msra.mxu0 0
        %918 = vmatprep.subr.bf16.mxu0 0
        %919 = vmatpush2.bf16.msra.mxu0 0
        %920 = vmatprep.subr.bf16.mxu0 0
        %921 = vmatpush2.bf16.msra.mxu0 0
        %922 = vmatprep.subr.bf16.mxu0 0
        %923 = vmatpush2.bf16.msra.mxu0 0
        %924 = vmatprep.mubr.bf16.mxu0 0
        %925 = vmatmul.mubr.bf16.gmra.mxu0 %v837
        %v926 = vpop.f32.mrf.mxu0
        %v927 = vadd.f32 0.0, %v926
        %v928 = vpop.f32.mrf.mxu0
        %v929 = vpop.f32.mrf.mxu0
        %v930 = vadd.f32 0.0, %v929
        %v931 = vpop.f32.mrf.mxu0
        %932 = vdwg.mxu0
        %v937 = vunpack.c.l.b16 %v810
        %v938 = vunpack.c.l.b16 %v811
        %v939 = vunpack.c.l.b16 %v812
        %v940 = vunpack.c.l.b16 %v813
        %v941 = vpack.c.b16 %v938, %v937
        %v942 = vpack.c.b16 %v940, %v939
        %945 = vmatprep.subr.bf16.mxu0 0
        %946 = vmatpush1.bf16.msra.mxu0 0
        %947 = vmatprep.subr.bf16.mxu0 0
        %948 = vmatpush1.bf16.msra.mxu0 0
        %949 = vmatprep.subr.bf16.mxu0 0
        %950 = vmatpush1.bf16.msra.mxu0 0
        %951 = vmatprep.subr.bf16.mxu0 0
        %952 = vmatpush1.bf16.msra.mxu0 0
        %953 = vmatprep.subr.bf16.mxu0 0
        %954 = vmatpush1.bf16.msra.mxu0 0
        %955 = vmatprep.subr.bf16.mxu0 0
        %956 = vmatpush1.bf16.msra.mxu0 0
        %957 = vmatprep.subr.bf16.mxu0 0
        %958 = vmatpush1.bf16.msra.mxu0 %v942
        %959 = vmatprep.subr.bf16.mxu0 0
        %960 = vmatpush1.bf16.msra.mxu0 %v941
        %961 = vmatprep.subr.bf16.mxu0 0
        %962 = vmatpush2.bf16.msra.mxu0 0
        %963 = vmatprep.subr.bf16.mxu0 0
        %964 = vmatpush2.bf16.msra.mxu0 0
        %965 = vmatprep.subr.bf16.mxu0 0
        %966 = vmatpush2.bf16.msra.mxu0 0
        %967 = vmatprep.subr.bf16.mxu0 0
        %968 = vmatpush2.bf16.msra.mxu0 0
        %969 = vmatprep.subr.bf16.mxu0 0
        %970 = vmatpush2.bf16.msra.mxu0 0
        %971 = vmatprep.subr.bf16.mxu0 0
        %972 = vmatpush2.bf16.msra.mxu0 0
        %973 = vmatprep.subr.bf16.mxu0 0
        %974 = vmatpush2.bf16.msra.mxu0 0
        %975 = vmatprep.subr.bf16.mxu0 0
        %976 = vmatpush2.bf16.msra.mxu0 0
        %977 = vmatprep.mubr.bf16.mxu0 0
        %978 = vmatmul.mubr.bf16.gmra.mxu0 %v837
        %v979 = vpop.f32.mrf.mxu0
        %v980 = vadd.f32 0.0, %v979
        %v981 = vpop.f32.mrf.mxu0
        %v982 = vpop.f32.mrf.mxu0
        %v983 = vadd.f32 0.0, %v982
        %v984 = vpop.f32.mrf.mxu0
        %985 = vdwg.mxu0
        %v990 = vunpack.c.l.b16 %v814
        %v991 = vunpack.c.l.b16 %v815
        %v992 = vunpack.c.l.b16 %v816
        %v993 = vunpack.c.l.b16 %v817
        %v994 = vpack.c.b16 %v991, %v990
        %v995 = vpack.c.b16 %v993, %v992
        %998 = vmatprep.subr.bf16.mxu0 0
        %999 = vmatpush1.bf16.msra.mxu0 0
        %1000 = vmatprep.subr.bf16.mxu0 0
        %1001 = vmatpush1.bf16.msra.mxu0 0
        %1002 = vmatprep.subr.bf16.mxu0 0
        %1003 = vmatpush1.bf16.msra.mxu0 0
        %1004 = vmatprep.subr.bf16.mxu0 0
        %1005 = vmatpush1.bf16.msra.mxu0 0
        %1006 = vmatprep.subr.bf16.mxu0 0
        %1007 = vmatpush1.bf16.msra.mxu0 0
        %1008 = vmatprep.subr.bf16.mxu0 0
        %1009 = vmatpush1.bf16.msra.mxu0 0
        %1010 = vmatprep.subr.bf16.mxu0 0
        %1011 = vmatpush1.bf16.msra.mxu0 %v995
        %1012 = vmatprep.subr.bf16.mxu0 0
        %1013 = vmatpush1.bf16.msra.mxu0 %v994
        %1014 = vmatprep.subr.bf16.mxu0 0
        %1015 = vmatpush2.bf16.msra.mxu0 0
        %1016 = vmatprep.subr.bf16.mxu0 0
        %1017 = vmatpush2.bf16.msra.mxu0 0
        %1018 = vmatprep.subr.bf16.mxu0 0
        %1019 = vmatpush2.bf16.msra.mxu0 0
        %1020 = vmatprep.subr.bf16.mxu0 0
        %1021 = vmatpush2.bf16.msra.mxu0 0
        %1022 = vmatprep.subr.bf16.mxu0 0
        %1023 = vmatpush2.bf16.msra.mxu0 0
        %1024 = vmatprep.subr.bf16.mxu0 0
        %1025 = vmatpush2.bf16.msra.mxu0 0
        %1026 = vmatprep.subr.bf16.mxu0 0
        %1027 = vmatpush2.bf16.msra.mxu0 0
        %1028 = vmatprep.subr.bf16.mxu0 0
        %1029 = vmatpush2.bf16.msra.mxu0 0
        %1030 = vmatprep.mubr.bf16.mxu0 0
        %1031 = vmatmul.mubr.bf16.gmra.mxu0 %v837
        %v1032 = vpop.f32.mrf.mxu0
        %v1033 = vadd.f32 0.0, %v1032
        %v1034 = vpop.f32.mrf.mxu0
        %v1035 = vpop.f32.mrf.mxu0
        %v1036 = vadd.f32 0.0, %v1035
        %v1037 = vpop.f32.mrf.mxu0
        %1038 = vdwg.mxu0
        %v1039 = vpack.c.bf16 %v877, %v874
        %v1040 = vpack.c.bf16 %v930, %v927
        %v1041 = vpack.c.bf16 %v983, %v980
        %v1042 = vpack.c.bf16 %v1036, %v1033
        %v1043 = vld [vmem:[#allocation2] sm:$0xf]
        %v1044 = vld [vmem:[#allocation2 + $0x4] sm:$0xf]
        %v1045 = vld [vmem:[#allocation2 + $0x8] sm:$0xf]
        %v1046 = vld [vmem:[#allocation2 + $0xc] sm:$0xf]
        %vm1047 = vcmask 64512
        %v1049 = vsel %vm1047, %v1039, 0
        %v1052 = vsel %vm1047, %v1043, 0
        %1054 = vmatprep.subr.bf16.mxu0 0
        %1055 = vmatpush1.bf16.xpose.msra.mxu0 0
        %1056 = vmatprep.subr.bf16.mxu0 0
        %1057 = vmatpush1.bf16.xpose.msra.mxu0 0
        %1058 = vmatprep.subr.bf16.mxu0 0
        %1059 = vmatpush1.bf16.xpose.msra.mxu0 0
        %1060 = vmatprep.subr.bf16.mxu0 0
        %1061 = vmatpush1.bf16.xpose.msra.mxu0 0
        %1062 = vmatprep.subr.bf16.mxu0 0
        %1063 = vmatpush1.bf16.xpose.msra.mxu0 0
        %1064 = vmatprep.subr.bf16.mxu0 0
        %1065 = vmatpush1.bf16.xpose.msra.mxu0 0
        %1066 = vmatprep.subr.bf16.mxu0 0
        %1067 = vmatpush1.bf16.xpose.msra.mxu0 0
        %1068 = vmatprep.subr.bf16.mxu0 0
        %1069 = vmatpush1.bf16.xpose.msra.mxu0 %v1052
        %1070 = vmatprep.subr.bf16.mxu0 0
        %1071 = vmatpush2.bf16.xpose.msra.mxu0 0
        %1072 = vmatprep.subr.bf16.mxu0 0
        %1073 = vmatpush2.bf16.xpose.msra.mxu0 0
        %1074 = vmatprep.subr.bf16.mxu0 0
        %1075 = vmatpush2.bf16.xpose.msra.mxu0 0
        %1076 = vmatprep.subr.bf16.mxu0 0
        %1077 = vmatpush2.bf16.xpose.msra.mxu0 0
        %1078 = vmatprep.subr.bf16.mxu0 0
        %1079 = vmatpush2.bf16.xpose.msra.mxu0 0
        %1080 = vmatprep.subr.bf16.mxu0 0
        %1081 = vmatpush2.bf16.xpose.msra.mxu0 0
        %1082 = vmatprep.subr.bf16.mxu0 0
        %1083 = vmatpush2.bf16.xpose.msra.mxu0 0
        %1084 = vmatprep.subr.bf16.mxu0 0
        %1085 = vmatpush2.bf16.xpose.msra.mxu0 0
        %1086 = vmatprep.mubr.bf16.mxu0 0
        %1087 = vmatmul.mubr.bf16.gmra.mxu0 %v1049
        %v1088 = vpop.f32.mrf.mxu0
        %v1089 = vadd.f32 0.0, %v1088
        %v1090 = vpop.f32.mrf.mxu0
        %v1091 = vpop.f32.mrf.mxu0
        %v1092 = vadd.f32 0.0, %v1091
        %v1093 = vpop.f32.mrf.mxu0
        %1094 = vdwg.mxu0
        %v1096 = vsel %vm1047, %v1040, 0
        %v1099 = vsel %vm1047, %v1044, 0
        %1101 = vmatprep.subr.bf16.mxu0 0
        %1102 = vmatpush1.bf16.xpose.msra.mxu0 0
        %1103 = vmatprep.subr.bf16.mxu0 0
        %1104 = vmatpush1.bf16.xpose.msra.mxu0 0
        %1105 = vmatprep.subr.bf16.mxu0 0
        %1106 = vmatpush1.bf16.xpose.msra.mxu0 0
        %1107 = vmatprep.subr.bf16.mxu0 0
        %1108 = vmatpush1.bf16.xpose.msra.mxu0 0
        %1109 = vmatprep.subr.bf16.mxu0 0
        %1110 = vmatpush1.bf16.xpose.msra.mxu0 0
        %1111 = vmatprep.subr.bf16.mxu0 0
        %1112 = vmatpush1.bf16.xpose.msra.mxu0 0
        %1113 = vmatprep.subr.bf16.mxu0 0
        %1114 = vmatpush1.bf16.xpose.msra.mxu0 0
        %1115 = vmatprep.subr.bf16.mxu0 0
        %1116 = vmatpush1.bf16.xpose.msra.mxu0 %v1099
        %1117 = vmatprep.subr.bf16.mxu0 0
        %1118 = vmatpush2.bf16.xpose.msra.mxu0 0
        %1119 = vmatprep.subr.bf16.mxu0 0
        %1120 = vmatpush2.bf16.xpose.msra.mxu0 0
        %1121 = vmatprep.subr.bf16.mxu0 0
        %1122 = vmatpush2.bf16.xpose.msra.mxu0 0
        %1123 = vmatprep.subr.bf16.mxu0 0
        %1124 = vmatpush2.bf16.xpose.msra.mxu0 0
        %1125 = vmatprep.subr.bf16.mxu0 0
        %1126 = vmatpush2.bf16.xpose.msra.mxu0 0
        %1127 = vmatprep.subr.bf16.mxu0 0
        %1128 = vmatpush2.bf16.xpose.msra.mxu0 0
        %1129 = vmatprep.subr.bf16.mxu0 0
        %1130 = vmatpush2.bf16.xpose.msra.mxu0 0
        %1131 = vmatprep.subr.bf16.mxu0 0
        %1132 = vmatpush2.bf16.xpose.msra.mxu0 0
        %1133 = vmatprep.mubr.bf16.mxu0 0
        %1134 = vmatmul.mubr.bf16.gmra.mxu0 %v1096
        %v1135 = vpop.f32.mrf.mxu0
        %v1136 = vadd.f32 0.0, %v1135
        %v1137 = vpop.f32.mrf.mxu0
        %v1138 = vpop.f32.mrf.mxu0
        %v1139 = vadd.f32 0.0, %v1138
        %v1140 = vpop.f32.mrf.mxu0
        %1141 = vdwg.mxu0
        %v1143 = vsel %vm1047, %v1041, 0
        %v1146 = vsel %vm1047, %v1045, 0
        %1148 = vmatprep.subr.bf16.mxu0 0
        %1149 = vmatpush1.bf16.xpose.msra.mxu0 0
        %1150 = vmatprep.subr.bf16.mxu0 0
        %1151 = vmatpush1.bf16.xpose.msra.mxu0 0
        %1152 = vmatprep.subr.bf16.mxu0 0
        %1153 = vmatpush1.bf16.xpose.msra.mxu0 0
        %1154 = vmatprep.subr.bf16.mxu0 0
        %1155 = vmatpush1.bf16.xpose.msra.mxu0 0
        %1156 = vmatprep.subr.bf16.mxu0 0
        %1157 = vmatpush1.bf16.xpose.msra.mxu0 0
        %1158 = vmatprep.subr.bf16.mxu0 0
        %1159 = vmatpush1.bf16.xpose.msra.mxu0 0
        %1160 = vmatprep.subr.bf16.mxu0 0
        %1161 = vmatpush1.bf16.xpose.msra.mxu0 0
        %1162 = vmatprep.subr.bf16.mxu0 0
        %1163 = vmatpush1.bf16.xpose.msra.mxu0 %v1146
        %1164 = vmatprep.subr.bf16.mxu0 0
        %1165 = vmatpush2.bf16.xpose.msra.mxu0 0
        %1166 = vmatprep.subr.bf16.mxu0 0
        %1167 = vmatpush2.bf16.xpose.msra.mxu0 0
        %1168 = vmatprep.subr.bf16.mxu0 0
        %1169 = vmatpush2.bf16.xpose.msra.mxu0 0
        %1170 = vmatprep.subr.bf16.mxu0 0
        %1171 = vmatpush2.bf16.xpose.msra.mxu0 0
        %1172 = vmatprep.subr.bf16.mxu0 0
        %1173 = vmatpush2.bf16.xpose.msra.mxu0 0
        %1174 = vmatprep.subr.bf16.mxu0 0
        %1175 = vmatpush2.bf16.xpose.msra.mxu0 0
        %1176 = vmatprep.subr.bf16.mxu0 0
        %1177 = vmatpush2.bf16.xpose.msra.mxu0 0
        %1178 = vmatprep.subr.bf16.mxu0 0
        %1179 = vmatpush2.bf16.xpose.msra.mxu0 0
        %1180 = vmatprep.mubr.bf16.mxu0 0
        %1181 = vmatmul.mubr.bf16.gmra.mxu0 %v1143
        %v1182 = vpop.f32.mrf.mxu0
        %v1183 = vadd.f32 0.0, %v1182
        %v1184 = vpop.f32.mrf.mxu0
        %v1185 = vpop.f32.mrf.mxu0
        %v1186 = vadd.f32 0.0, %v1185
        %v1187 = vpop.f32.mrf.mxu0
        %1188 = vdwg.mxu0
        %v1190 = vsel %vm1047, %v1042, 0
        %v1193 = vsel %vm1047, %v1046, 0
        %1195 = vmatprep.subr.bf16.mxu0 0
        %1196 = vmatpush1.bf16.xpose.msra.mxu0 0
        %1197 = vmatprep.subr.bf16.mxu0 0
        %1198 = vmatpush1.bf16.xpose.msra.mxu0 0
        %1199 = vmatprep.subr.bf16.mxu0 0
        %1200 = vmatpush1.bf16.xpose.msra.mxu0 0
        %1201 = vmatprep.subr.bf16.mxu0 0
        %1202 = vmatpush1.bf16.xpose.msra.mxu0 0
        %1203 = vmatprep.subr.bf16.mxu0 0
        %1204 = vmatpush1.bf16.xpose.msra.mxu0 0
        %1205 = vmatprep.subr.bf16.mxu0 0
        %1206 = vmatpush1.bf16.xpose.msra.mxu0 0
        %1207 = vmatprep.subr.bf16.mxu0 0
        %1208 = vmatpush1.bf16.xpose.msra.mxu0 0
        %1209 = vmatprep.subr.bf16.mxu0 0
        %1210 = vmatpush1.bf16.xpose.msra.mxu0 %v1193
        %1211 = vmatprep.subr.bf16.mxu0 0
        %1212 = vmatpush2.bf16.xpose.msra.mxu0 0
        %1213 = vmatprep.subr.bf16.mxu0 0
        %1214 = vmatpush2.bf16.xpose.msra.mxu0 0
        %1215 = vmatprep.subr.bf16.mxu0 0
        %1216 = vmatpush2.bf16.xpose.msra.mxu0 0
        %1217 = vmatprep.subr.bf16.mxu0 0
        %1218 = vmatpush2.bf16.xpose.msra.mxu0 0
        %1219 = vmatprep.subr.bf16.mxu0 0
        %1220 = vmatpush2.bf16.xpose.msra.mxu0 0
        %1221 = vmatprep.subr.bf16.mxu0 0
        %1222 = vmatpush2.bf16.xpose.msra.mxu0 0
        %1223 = vmatprep.subr.bf16.mxu0 0
        %1224 = vmatpush2.bf16.xpose.msra.mxu0 0
        %1225 = vmatprep.subr.bf16.mxu0 0
        %1226 = vmatpush2.bf16.xpose.msra.mxu0 0
        %1227 = vmatprep.mubr.bf16.mxu0 0
        %1228 = vmatmul.mubr.bf16.gmra.mxu0 %v1190
        %v1229 = vpop.f32.mrf.mxu0
        %v1230 = vadd.f32 0.0, %v1229
        %v1231 = vpop.f32.mrf.mxu0
        %v1232 = vpop.f32.mrf.mxu0
        %v1233 = vadd.f32 0.0, %v1232
        %v1234 = vpop.f32.mrf.mxu0
        %1235 = vdwg.mxu0
        %v1236 = vsel %vm1047, %v1089, -inf
        %1237 = vmax.xlane.f32.xlu0 %v1236
        %v1238 = vpop.xlane.xlu0 %1237
        %v1239 = vsel %vm1047, %v1092, -inf
        %1240 = vmax.xlane.f32.xlu0 %v1239
        %v1241 = vpop.xlane.xlu0 %1240
        %v1242 = vsel %vm1047, %v1136, -inf
        %1243 = vmax.xlane.f32.xlu0 %v1242
        %v1244 = vpop.xlane.xlu0 %1243
        %v1245 = vsel %vm1047, %v1139, -inf
        %1246 = vmax.xlane.f32.xlu0 %v1245
        %v1247 = vpop.xlane.xlu0 %1246
        %v1248 = vsel %vm1047, %v1183, -inf
        %1249 = vmax.xlane.f32.xlu0 %v1248
        %v1250 = vpop.xlane.xlu0 %1249
        %v1251 = vsel %vm1047, %v1186, -inf
        %1252 = vmax.xlane.f32.xlu0 %v1251
        %v1253 = vpop.xlane.xlu0 %1252
        %v1254 = vsel %vm1047, %v1230, -inf
        %1255 = vmax.xlane.f32.xlu0 %v1254
        %v1256 = vpop.xlane.xlu0 %1255
        %v1257 = vsel %vm1047, %v1233, -inf
        %1258 = vmax.xlane.f32.xlu0 %v1257
        %v1259 = vpop.xlane.xlu0 %1258
        %v1260 = vsub.f32 %v1089, %v1238
        %v1261 = vsub.f32 %v1092, %v1241
        %v1262 = vsub.f32 %v1136, %v1244
        %v1263 = vsub.f32 %v1139, %v1247
        %v1264 = vsub.f32 %v1183, %v1250
        %v1265 = vsub.f32 %v1186, %v1253
        %v1266 = vsub.f32 %v1230, %v1256
        %v1267 = vsub.f32 %v1233, %v1259
        %v1268 = vmul.f32 %v1260, 1.442695
        %v1269 = vpow.pop %v1268
        %v1270 = vmul.f32 %v1261, 1.442695
        %v1271 = vpow.pop %v1270
        %v1272 = vmul.f32 %v1262, 1.442695
        %v1273 = vpow.pop %v1272
        %v1274 = vmul.f32 %v1263, 1.442695
        %v1275 = vpow.pop %v1274
        %v1276 = vmul.f32 %v1264, 1.442695
        %v1277 = vpow.pop %v1276
        %v1278 = vmul.f32 %v1265, 1.442695
        %v1279 = vpow.pop %v1278
        %v1280 = vmul.f32 %v1266, 1.442695
        %v1281 = vpow.pop %v1280
        %v1282 = vmul.f32 %v1267, 1.442695
        %v1283 = vpow.pop %v1282
        %v1284 = vsel %vm1047, %v1269, 0.0
        %1285 = vadd.xlane.f32.xlu0 %v1284
        %v1286 = vpop.xlane.xlu0 %1285
        %v1287 = vsel %vm1047, %v1271, 0.0
        %1288 = vadd.xlane.f32.xlu0 %v1287
        %v1289 = vpop.xlane.xlu0 %1288
        %v1290 = vsel %vm1047, %v1273, 0.0
        %1291 = vadd.xlane.f32.xlu0 %v1290
        %v1292 = vpop.xlane.xlu0 %1291
        %v1293 = vsel %vm1047, %v1275, 0.0
        %1294 = vadd.xlane.f32.xlu0 %v1293
        %v1295 = vpop.xlane.xlu0 %1294
        %v1296 = vsel %vm1047, %v1277, 0.0
        %1297 = vadd.xlane.f32.xlu0 %v1296
        %v1298 = vpop.xlane.xlu0 %1297
        %v1299 = vsel %vm1047, %v1279, 0.0
        %1300 = vadd.xlane.f32.xlu0 %v1299
        %v1301 = vpop.xlane.xlu0 %1300
        %v1302 = vsel %vm1047, %v1281, 0.0
        %1303 = vadd.xlane.f32.xlu0 %v1302
        %v1304 = vpop.xlane.xlu0 %1303
        %v1305 = vsel %vm1047, %v1283, 0.0
        %1306 = vadd.xlane.f32.xlu0 %v1305
        %v1307 = vpop.xlane.xlu0 %1306
        %v1308 = vrcp.pop %v1286
        %v1309 = vrcp.pop %v1289
        %v1310 = vrcp.pop %v1292
        %v1311 = vrcp.pop %v1295
        %v1312 = vrcp.pop %v1298
        %v1313 = vrcp.pop %v1301
        %v1314 = vrcp.pop %v1304
        %v1315 = vrcp.pop %v1307
        %v1316 = vmul.f32 %v1269, %v1308
        %v1317 = vmul.f32 %v1271, %v1309
        %v1318 = vmul.f32 %v1273, %v1310
        %v1319 = vmul.f32 %v1275, %v1311
        %v1320 = vmul.f32 %v1277, %v1312
        %v1321 = vmul.f32 %v1279, %v1313
        %v1322 = vmul.f32 %v1281, %v1314
        %v1323 = vmul.f32 %v1283, %v1315
        %v1324 = vpack.c.bf16 %v1317, %v1316
        %v1325 = vpack.c.bf16 %v1319, %v1318
        %v1326 = vpack.c.bf16 %v1321, %v1320
        %v1327 = vpack.c.bf16 %v1323, %v1322
        %v1328 = vld [vmem:[#allocation3] sm:$0xf]
        %v1329 = vld [vmem:[#allocation3 + $0x4] sm:$0xf]
        %v1330 = vld [vmem:[#allocation3 + $0x8] sm:$0xf]
        %v1331 = vld [vmem:[#allocation3 + $0xc] sm:$0xf]
        %v1333 = vsel %vm1047, %v1324, 0
        %vm1335 = vcmask 1043456
        %v1337 = vsel %vm1335, %v1328, 0
        %1339 = vmatprep.subr.bf16.mxu0 0
        %1340 = vmatpush1.bf16.msra.mxu0 0
        %1341 = vmatprep.subr.bf16.mxu0 0
        %1342 = vmatpush1.bf16.msra.mxu0 0
        %1343 = vmatprep.subr.bf16.mxu0 0
        %1344 = vmatpush1.bf16.msra.mxu0 0
        %1345 = vmatprep.subr.bf16.mxu0 0
        %1346 = vmatpush1.bf16.msra.mxu0 0
        %1347 = vmatprep.subr.bf16.mxu0 0
        %1348 = vmatpush1.bf16.msra.mxu0 0
        %1349 = vmatprep.subr.bf16.mxu0 0
        %1350 = vmatpush1.bf16.msra.mxu0 0
        %1351 = vmatprep.subr.bf16.mxu0 0
        %1352 = vmatpush1.bf16.msra.mxu0 0
        %1353 = vmatprep.subr.bf16.mxu0 0
        %1354 = vmatpush1.bf16.msra.mxu0 %v1337
        %1355 = vmatprep.subr.bf16.mxu0 0
        %1356 = vmatpush2.bf16.msra.mxu0 0
        %1357 = vmatprep.subr.bf16.mxu0 0
        %1358 = vmatpush2.bf16.msra.mxu0 0
        %1359 = vmatprep.subr.bf16.mxu0 0
        %1360 = vmatpush2.bf16.msra.mxu0 0
        %1361 = vmatprep.subr.bf16.mxu0 0
        %1362 = vmatpush2.bf16.msra.mxu0 0
        %1363 = vmatprep.subr.bf16.mxu0 0
        %1364 = vmatpush2.bf16.msra.mxu0 0
        %1365 = vmatprep.subr.bf16.mxu0 0
        %1366 = vmatpush2.bf16.msra.mxu0 0
        %1367 = vmatprep.subr.bf16.mxu0 0
        %1368 = vmatpush2.bf16.msra.mxu0 0
        %1369 = vmatprep.subr.bf16.mxu0 0
        %1370 = vmatpush2.bf16.msra.mxu0 0
        %1371 = vmatprep.mubr.bf16.mxu0 0
        %1372 = vmatmul.mubr.bf16.gmra.mxu0 %v1333
        %v1373 = vpop.f32.mrf.mxu0
        %v1374 = vadd.f32 0.0, %v1373
        %v1375 = vpop.f32.mrf.mxu0
        %v1376 = vpop.f32.mrf.mxu0
        %v1377 = vadd.f32 0.0, %v1376
        %v1378 = vpop.f32.mrf.mxu0
        %1379 = vdwg.mxu0
        %v1381 = vsel %vm1047, %v1325, 0
        %v1384 = vsel %vm1335, %v1329, 0
        %1386 = vmatprep.subr.bf16.mxu0 0
        %1387 = vmatpush1.bf16.msra.mxu0 0
        %1388 = vmatprep.subr.bf16.mxu0 0
        %1389 = vmatpush1.bf16.msra.mxu0 0
        %1390 = vmatprep.subr.bf16.mxu0 0
        %1391 = vmatpush1.bf16.msra.mxu0 0
        %1392 = vmatprep.subr.bf16.mxu0 0
        %1393 = vmatpush1.bf16.msra.mxu0 0
        %1394 = vmatprep.subr.bf16.mxu0 0
        %1395 = vmatpush1.bf16.msra.mxu0 0
        %1396 = vmatprep.subr.bf16.mxu0 0
        %1397 = vmatpush1.bf16.msra.mxu0 0
        %1398 = vmatprep.subr.bf16.mxu0 0
        %1399 = vmatpush1.bf16.msra.mxu0 0
        %1400 = vmatprep.subr.bf16.mxu0 0
        %1401 = vmatpush1.bf16.msra.mxu0 %v1384
        %1402 = vmatprep.subr.bf16.mxu0 0
        %1403 = vmatpush2.bf16.msra.mxu0 0
        %1404 = vmatprep.subr.bf16.mxu0 0
        %1405 = vmatpush2.bf16.msra.mxu0 0
        %1406 = vmatprep.subr.bf16.mxu0 0
        %1407 = vmatpush2.bf16.msra.mxu0 0
        %1408 = vmatprep.subr.bf16.mxu0 0
        %1409 = vmatpush2.bf16.msra.mxu0 0
        %1410 = vmatprep.subr.bf16.mxu0 0
        %1411 = vmatpush2.bf16.msra.mxu0 0
        %1412 = vmatprep.subr.bf16.mxu0 0
        %1413 = vmatpush2.bf16.msra.mxu0 0
        %1414 = vmatprep.subr.bf16.mxu0 0
        %1415 = vmatpush2.bf16.msra.mxu0 0
        %1416 = vmatprep.subr.bf16.mxu0 0
        %1417 = vmatpush2.bf16.msra.mxu0 0
        %1418 = vmatprep.mubr.bf16.mxu0 0
        %1419 = vmatmul.mubr.bf16.gmra.mxu0 %v1381
        %v1420 = vpop.f32.mrf.mxu0
        %v1421 = vadd.f32 0.0, %v1420
        %v1422 = vpop.f32.mrf.mxu0
        %v1423 = vpop.f32.mrf.mxu0
        %v1424 = vadd.f32 0.0, %v1423
        %v1425 = vpop.f32.mrf.mxu0
        %1426 = vdwg.mxu0
        %v1428 = vsel %vm1047, %v1326, 0
        %v1431 = vsel %vm1335, %v1330, 0
        %1433 = vmatprep.subr.bf16.mxu0 0
        %1434 = vmatpush1.bf16.msra.mxu0 0
        %1435 = vmatprep.subr.bf16.mxu0 0
        %1436 = vmatpush1.bf16.msra.mxu0 0
        %1437 = vmatprep.subr.bf16.mxu0 0
        %1438 = vmatpush1.bf16.msra.mxu0 0
        %1439 = vmatprep.subr.bf16.mxu0 0
        %1440 = vmatpush1.bf16.msra.mxu0 0
        %1441 = vmatprep.subr.bf16.mxu0 0
        %1442 = vmatpush1.bf16.msra.mxu0 0
        %1443 = vmatprep.subr.bf16.mxu0 0
        %1444 = vmatpush1.bf16.msra.mxu0 0
        %1445 = vmatprep.subr.bf16.mxu0 0
        %1446 = vmatpush1.bf16.msra.mxu0 0
        %1447 = vmatprep.subr.bf16.mxu0 0
        %1448 = vmatpush1.bf16.msra.mxu0 %v1431
        %1449 = vmatprep.subr.bf16.mxu0 0
        %1450 = vmatpush2.bf16.msra.mxu0 0
        %1451 = vmatprep.subr.bf16.mxu0 0
        %1452 = vmatpush2.bf16.msra.mxu0 0
        %1453 = vmatprep.subr.bf16.mxu0 0
        %1454 = vmatpush2.bf16.msra.mxu0 0
        %1455 = vmatprep.subr.bf16.mxu0 0
        %1456 = vmatpush2.bf16.msra.mxu0 0
        %1457 = vmatprep.subr.bf16.mxu0 0
        %1458 = vmatpush2.bf16.msra.mxu0 0
        %1459 = vmatprep.subr.bf16.mxu0 0
        %1460 = vmatpush2.bf16.msra.mxu0 0
        %1461 = vmatprep.subr.bf16.mxu0 0
        %1462 = vmatpush2.bf16.msra.mxu0 0
        %1463 = vmatprep.subr.bf16.mxu0 0
        %1464 = vmatpush2.bf16.msra.mxu0 0
        %1465 = vmatprep.mubr.bf16.mxu0 0
        %1466 = vmatmul.mubr.bf16.gmra.mxu0 %v1428
        %v1467 = vpop.f32.mrf.mxu0
        %v1468 = vadd.f32 0.0, %v1467
        %v1469 = vpop.f32.mrf.mxu0
        %v1470 = vpop.f32.mrf.mxu0
        %v1471 = vadd.f32 0.0, %v1470
        %v1472 = vpop.f32.mrf.mxu0
        %1473 = vdwg.mxu0
        %v1475 = vsel %vm1047, %v1327, 0
        %v1478 = vsel %vm1335, %v1331, 0
        %1480 = vmatprep.subr.bf16.mxu0 0
        %1481 = vmatpush1.bf16.msra.mxu0 0
        %1482 = vmatprep.subr.bf16.mxu0 0
        %1483 = vmatpush1.bf16.msra.mxu0 0
        %1484 = vmatprep.subr.bf16.mxu0 0
        %1485 = vmatpush1.bf16.msra.mxu0 0
        %1486 = vmatprep.subr.bf16.mxu0 0
        %1487 = vmatpush1.bf16.msra.mxu0 0
        %1488 = vmatprep.subr.bf16.mxu0 0
        %1489 = vmatpush1.bf16.msra.mxu0 0
        %1490 = vmatprep.subr.bf16.mxu0 0
        %1491 = vmatpush1.bf16.msra.mxu0 0
        %1492 = vmatprep.subr.bf16.mxu0 0
        %1493 = vmatpush1.bf16.msra.mxu0 0
        %1494 = vmatprep.subr.bf16.mxu0 0
        %1495 = vmatpush1.bf16.msra.mxu0 %v1478
        %1496 = vmatprep.subr.bf16.mxu0 0
        %1497 = vmatpush2.bf16.msra.mxu0 0
        %1498 = vmatprep.subr.bf16.mxu0 0
        %1499 = vmatpush2.bf16.msra.mxu0 0
        %1500 = vmatprep.subr.bf16.mxu0 0
        %1501 = vmatpush2.bf16.msra.mxu0 0
        %1502 = vmatprep.subr.bf16.mxu0 0
        %1503 = vmatpush2.bf16.msra.mxu0 0
        %1504 = vmatprep.subr.bf16.mxu0 0
        %1505 = vmatpush2.bf16.msra.mxu0 0
        %1506 = vmatprep.subr.bf16.mxu0 0
        %1507 = vmatpush2.bf16.msra.mxu0 0
        %1508 = vmatprep.subr.bf16.mxu0 0
        %1509 = vmatpush2.bf16.msra.mxu0 0
        %1510 = vmatprep.subr.bf16.mxu0 0
        %1511 = vmatpush2.bf16.msra.mxu0 0
        %1512 = vmatprep.mubr.bf16.mxu0 0
        %1513 = vmatmul.mubr.bf16.gmra.mxu0 %v1475
        %v1514 = vpop.f32.mrf.mxu0
        %v1515 = vadd.f32 0.0, %v1514
        %v1516 = vpop.f32.mrf.mxu0
        %v1517 = vpop.f32.mrf.mxu0
        %v1518 = vadd.f32 0.0, %v1517
        %v1519 = vpop.f32.mrf.mxu0
        %1520 = vdwg.mxu0
        %v1521 = vpack.c.bf16 %v1377, %v1374
        %v1522 = vpack.c.bf16 %v1424, %v1421
        %v1523 = vpack.c.bf16 %v1471, %v1468
        %v1524 = vpack.c.bf16 %v1518, %v1515
        %v1525 = vld [vmem:[%s5] sm:$0xf]
        %v1526 = vld [vmem:[%s5 + $0x4] sm:$0xf]
        %v1527 = vld [vmem:[%s5 + $0x8] sm:$0xf]
        %v1528 = vld [vmem:[%s5 + $0xc] sm:$0xf]
        %v1530 = vsel %vm1047, %v1521, 0
        %v1533 = vsel %vm1335, %v1525, 0
        %1535 = vmatprep.subr.bf16.mxu0 0
        %1536 = vmatpush1.bf16.msra.mxu0 0
        %1537 = vmatprep.subr.bf16.mxu0 0
        %1538 = vmatpush1.bf16.msra.mxu0 0
        %1539 = vmatprep.subr.bf16.mxu0 0
        %1540 = vmatpush1.bf16.msra.mxu0 0
        %1541 = vmatprep.subr.bf16.mxu0 0
        %1542 = vmatpush1.bf16.msra.mxu0 0
        %1543 = vmatprep.subr.bf16.mxu0 0
        %1544 = vmatpush1.bf16.msra.mxu0 0
        %1545 = vmatprep.subr.bf16.mxu0 0
        %1546 = vmatpush1.bf16.msra.mxu0 0
        %1547 = vmatprep.subr.bf16.mxu0 0
        %1548 = vmatpush1.bf16.msra.mxu0 0
        %1549 = vmatprep.subr.bf16.mxu0 0
        %1550 = vmatpush1.bf16.msra.mxu0 %v1533
        %1551 = vmatprep.subr.bf16.mxu0 0
        %1552 = vmatpush2.bf16.msra.mxu0 0
        %1553 = vmatprep.subr.bf16.mxu0 0
        %1554 = vmatpush2.bf16.msra.mxu0 0
        %1555 = vmatprep.subr.bf16.mxu0 0
        %1556 = vmatpush2.bf16.msra.mxu0 0
        %1557 = vmatprep.subr.bf16.mxu0 0
        %1558 = vmatpush2.bf16.msra.mxu0 0
        %1559 = vmatprep.subr.bf16.mxu0 0
        %1560 = vmatpush2.bf16.msra.mxu0 0
        %1561 = vmatprep.subr.bf16.mxu0 0
        %1562 = vmatpush2.bf16.msra.mxu0 0
        %1563 = vmatprep.subr.bf16.mxu0 0
        %1564 = vmatpush2.bf16.msra.mxu0 0
        %1565 = vmatprep.subr.bf16.mxu0 0
        %1566 = vmatpush2.bf16.msra.mxu0 0
        %1567 = vmatprep.mubr.bf16.mxu0 0
        %1568 = vmatmul.mubr.bf16.gmra.mxu0 %v1530
        %v1569 = vpop.f32.mrf.mxu0
        %v1570 = vadd.f32 0.0, %v1569
        %v1571 = vpop.f32.mrf.mxu0
        %v1572 = vpop.f32.mrf.mxu0
        %v1573 = vadd.f32 0.0, %v1572
        %v1574 = vpop.f32.mrf.mxu0
        %1575 = vdwg.mxu0
        %v1577 = vsel %vm1047, %v1522, 0
        %v1580 = vsel %vm1335, %v1526, 0
        %1582 = vmatprep.subr.bf16.mxu0 0
        %1583 = vmatpush1.bf16.msra.mxu0 0
        %1584 = vmatprep.subr.bf16.mxu0 0
        %1585 = vmatpush1.bf16.msra.mxu0 0
        %1586 = vmatprep.subr.bf16.mxu0 0
        %1587 = vmatpush1.bf16.msra.mxu0 0
        %1588 = vmatprep.subr.bf16.mxu0 0
        %1589 = vmatpush1.bf16.msra.mxu0 0
        %1590 = vmatprep.subr.bf16.mxu0 0
        %1591 = vmatpush1.bf16.msra.mxu0 0
        %1592 = vmatprep.subr.bf16.mxu0 0
        %1593 = vmatpush1.bf16.msra.mxu0 0
        %1594 = vmatprep.subr.bf16.mxu0 0
        %1595 = vmatpush1.bf16.msra.mxu0 0
        %1596 = vmatprep.subr.bf16.mxu0 0
        %1597 = vmatpush1.bf16.msra.mxu0 %v1580
        %1598 = vmatprep.subr.bf16.mxu0 0
        %1599 = vmatpush2.bf16.msra.mxu0 0
        %1600 = vmatprep.subr.bf16.mxu0 0
        %1601 = vmatpush2.bf16.msra.mxu0 0
        %1602 = vmatprep.subr.bf16.mxu0 0
        %1603 = vmatpush2.bf16.msra.mxu0 0
        %1604 = vmatprep.subr.bf16.mxu0 0
        %1605 = vmatpush2.bf16.msra.mxu0 0
        %1606 = vmatprep.subr.bf16.mxu0 0
        %1607 = vmatpush2.bf16.msra.mxu0 0
        %1608 = vmatprep.subr.bf16.mxu0 0
        %1609 = vmatpush2.bf16.msra.mxu0 0
        %1610 = vmatprep.subr.bf16.mxu0 0
        %1611 = vmatpush2.bf16.msra.mxu0 0
        %1612 = vmatprep.subr.bf16.mxu0 0
        %1613 = vmatpush2.bf16.msra.mxu0 0
        %1614 = vmatprep.mubr.bf16.mxu0 0
        %1615 = vmatmul.mubr.bf16.gmra.mxu0 %v1577
        %v1616 = vpop.f32.mrf.mxu0
        %v1617 = vadd.f32 0.0, %v1616
        %v1618 = vpop.f32.mrf.mxu0
        %v1619 = vpop.f32.mrf.mxu0
        %v1620 = vadd.f32 0.0, %v1619
        %v1621 = vpop.f32.mrf.mxu0
        %1622 = vdwg.mxu0
        %v1624 = vsel %vm1047, %v1523, 0
        %v1627 = vsel %vm1335, %v1527, 0
        %1629 = vmatprep.subr.bf16.mxu0 0
        %1630 = vmatpush1.bf16.msra.mxu0 0
        %1631 = vmatprep.subr.bf16.mxu0 0
        %1632 = vmatpush1.bf16.msra.mxu0 0
        %1633 = vmatprep.subr.bf16.mxu0 0
        %1634 = vmatpush1.bf16.msra.mxu0 0
        %1635 = vmatprep.subr.bf16.mxu0 0
        %1636 = vmatpush1.bf16.msra.mxu0 0
        %1637 = vmatprep.subr.bf16.mxu0 0
        %1638 = vmatpush1.bf16.msra.mxu0 0
        %1639 = vmatprep.subr.bf16.mxu0 0
        %1640 = vmatpush1.bf16.msra.mxu0 0
        %1641 = vmatprep.subr.bf16.mxu0 0
        %1642 = vmatpush1.bf16.msra.mxu0 0
        %1643 = vmatprep.subr.bf16.mxu0 0
        %1644 = vmatpush1.bf16.msra.mxu0 %v1627
        %1645 = vmatprep.subr.bf16.mxu0 0
        %1646 = vmatpush2.bf16.msra.mxu0 0
        %1647 = vmatprep.subr.bf16.mxu0 0
        %1648 = vmatpush2.bf16.msra.mxu0 0
        %1649 = vmatprep.subr.bf16.mxu0 0
        %1650 = vmatpush2.bf16.msra.mxu0 0
        %1651 = vmatprep.subr.bf16.mxu0 0
        %1652 = vmatpush2.bf16.msra.mxu0 0
        %1653 = vmatprep.subr.bf16.mxu0 0
        %1654 = vmatpush2.bf16.msra.mxu0 0
        %1655 = vmatprep.subr.bf16.mxu0 0
        %1656 = vmatpush2.bf16.msra.mxu0 0
        %1657 = vmatprep.subr.bf16.mxu0 0
        %1658 = vmatpush2.bf16.msra.mxu0 0
        %1659 = vmatprep.subr.bf16.mxu0 0
        %1660 = vmatpush2.bf16.msra.mxu0 0
        %1661 = vmatprep.mubr.bf16.mxu0 0
        %1662 = vmatmul.mubr.bf16.gmra.mxu0 %v1624
        %v1663 = vpop.f32.mrf.mxu0
        %v1664 = vadd.f32 0.0, %v1663
        %v1665 = vpop.f32.mrf.mxu0
        %v1666 = vpop.f32.mrf.mxu0
        %v1667 = vadd.f32 0.0, %v1666
        %v1668 = vpop.f32.mrf.mxu0
        %1669 = vdwg.mxu0
        %v1671 = vsel %vm1047, %v1524, 0
        %v1674 = vsel %vm1335, %v1528, 0
        %1676 = vmatprep.subr.bf16.mxu0 0
        %1677 = vmatpush1.bf16.msra.mxu0 0
        %1678 = vmatprep.subr.bf16.mxu0 0
        %1679 = vmatpush1.bf16.msra.mxu0 0
        %1680 = vmatprep.subr.bf16.mxu0 0
        %1681 = vmatpush1.bf16.msra.mxu0 0
        %1682 = vmatprep.subr.bf16.mxu0 0
        %1683 = vmatpush1.bf16.msra.mxu0 0
        %1684 = vmatprep.subr.bf16.mxu0 0
        %1685 = vmatpush1.bf16.msra.mxu0 0
        %1686 = vmatprep.subr.bf16.mxu0 0
        %1687 = vmatpush1.bf16.msra.mxu0 0
        %1688 = vmatprep.subr.bf16.mxu0 0
        %1689 = vmatpush1.bf16.msra.mxu0 0
        %1690 = vmatprep.subr.bf16.mxu0 0
        %1691 = vmatpush1.bf16.msra.mxu0 %v1674
        %1692 = vmatprep.subr.bf16.mxu0 0
        %1693 = vmatpush2.bf16.msra.mxu0 0
        %1694 = vmatprep.subr.bf16.mxu0 0
        %1695 = vmatpush2.bf16.msra.mxu0 0
        %1696 = vmatprep.subr.bf16.mxu0 0
        %1697 = vmatpush2.bf16.msra.mxu0 0
        %1698 = vmatprep.subr.bf16.mxu0 0
        %1699 = vmatpush2.bf16.msra.mxu0 0
        %1700 = vmatprep.subr.bf16.mxu0 0
        %1701 = vmatpush2.bf16.msra.mxu0 0
        %1702 = vmatprep.subr.bf16.mxu0 0
        %1703 = vmatpush2.bf16.msra.mxu0 0
        %1704 = vmatprep.subr.bf16.mxu0 0
        %1705 = vmatpush2.bf16.msra.mxu0 0
        %1706 = vmatprep.subr.bf16.mxu0 0
        %1707 = vmatpush2.bf16.msra.mxu0 0
        %1708 = vmatprep.mubr.bf16.mxu0 0
        %1709 = vmatmul.mubr.bf16.gmra.mxu0 %v1671
        %v1710 = vpop.f32.mrf.mxu0
        %v1711 = vadd.f32 0.0, %v1710
        %v1712 = vpop.f32.mrf.mxu0
        %v1713 = vpop.f32.mrf.mxu0
        %v1714 = vadd.f32 0.0, %v1713
        %v1715 = vpop.f32.mrf.mxu0
        %1716 = vdwg.mxu0
        %v1717 = vsel %vm835, %v1570, 0.0
        %v1718 = vsel %vm835, %v1617, 0.0
        %v1719 = vadd.f32 %v1717, %v1718
        %v1720 = vsel %vm835, %v1664, 0.0
        %v1721 = vadd.f32 %v1719, %v1720
        %v1722 = vsel %vm835, %v1711, 0.0
        %v1723 = vadd.f32 %v1721, %v1722
        %v1724 = vsel %vm835, %v1573, 0.0
        %v1725 = vsel %vm835, %v1620, 0.0
        %v1726 = vadd.f32 %v1724, %v1725
        %v1727 = vsel %vm835, %v1667, 0.0
        %v1728 = vadd.f32 %v1726, %v1727
        %v1729 = vsel %vm835, %v1714, 0.0
        %v1730 = vadd.f32 %v1728, %v1729
        %v1731 = vld [vmem:[%s6] sm:$0x1]
        %v1733 = vlaneseq
        %v1734 = vshrl.u32 %v1733, 7
        %v1735 = vsub.s32 0, %v1734
        %v1736 = vrot.slane %v1731, %v1735
        %v1738 = vadd.f32 %v1723, %v1736
        %v1739 = vadd.f32 %v1730, %v1736
        %1740 = vst.msk [vmem:[%s309] sm:$0xff] %vm835, %v1738
        %1741 = vst.msk [vmem:[%s309 + $0x8] sm:$0xff] %vm835, %v1739
        %s1742 = sand.u32 %s202, 1
        %s1743 = scalar_lea.sflag [#allocation5], %s1742
        %s1744 = sand.u32 %s202, 1
        %s1745 = smul.addr %s1744, 16
        %s1746 = scalar_lea.vmem [#allocation4], %s1745
        // Predicated region
        $region53: #{tpu_custom_call.1} parent=47 // pred_check
          %p1747 = pneg %p212
        $region54: #{tpu_custom_call.1} parent=47 // pred_check_branch
          %1749 = sbr.rel (%p1747) target = $region56
        $region55: #{tpu_custom_call.1} parent=47 // pred_region
          %s1750 = smul.u32 2, %s26
          %s1752 = ssub.s32 256, 256
          %1753 = vsyncadd %s1743, %s1752
          %s1754 = smul.addr %s25, 2
          %s1755 = sadd.s32 %s1750, %s1754
          %s1756 = smul.addr %s1755, 128
          %s1757 = scalar_lea.hbm %s7, %s1756
          %s1758 = sshll.u32 %s1746, 4
          %s1759 = int_to_ptr.vmem [resolvable:$true] %s1758
          %1764 = dma.vmem_to_hbm [thread:$0]  %s1759, 256, %s1757, %s1743, 128, 128, 8
        $region56: #{tpu_custom_call.1} parent=47 // pred_fallthru
          _
      $region48: #{tpu_custom_call.1} parent=5 // pred_fallthru
        _
      %p1765 = scmp.le.s32.totalorder 2, %s16
      // Predicated region
      $region57: #{tpu_custom_call.1} parent=5 // pred_check
        %p1766 = pneg %p1765
      $region58: #{tpu_custom_call.1} parent=5 // pred_check_branch
        %1768 = sbr.rel (%p1766) target = $region60
      $region59: #{tpu_custom_call.1} parent=5 // pred_region
        %s1769 = ssub.s32 %s16, 2
        // Predicated region
        $region61: #{tpu_custom_call.1} parent=59 // pred_check
          %p1770 = pneg %p218
        $region62: #{tpu_custom_call.1} parent=59 // pred_check_branch
          %1772 = sbr.rel (%p1770) target = $region64
        $region63: #{tpu_custom_call.1} parent=59 // pred_region
          %s1773 = sand.u32 %s203, 1
          %s1774 = scalar_lea.sflag [#allocation5], %s1773
          %s1775 = sand.u32 %s203, 1
          %s1776 = smul.addr %s1775, 16
          %s1777 = scalar_lea.vmem [#allocation4], %s1776
          %1778 = dma.done %s1774, 256
        $region64: #{tpu_custom_call.1} parent=59 // pred_fallthru
          _
      $region60: #{tpu_custom_call.1} parent=5 // pred_fallthru
        _
    $region6: #{tpu_custom_call.1} parent=1 // loop_footer
      %s20 = sadd.s32 1, %s16
    $region7: #{tpu_custom_call.1} parent=1 // loop_footer_branch
      %15 = sbr.rel target = $region3
    $region8: #{tpu_custom_call.1} parent=1 // loop_exit
      _
    %1779 = vsyncpa [#allocation5], 1
    %s1780 = scalar_lea.sflag [#allocation5], 1
    %1781 = vsyncpa %s1780, 1

</llo_original>
